<compile_context>
chip_gen: v7x
topology: tpu7x:2x2x1
jax: 0.10.0
libtpu: 0.0.40
codegen_flags: <defaults>
</compile_context>

<pallas_src>
import functools
import math

import jax
import jax.numpy as jnp
from jax import lax
from jax.experimental import pallas as pl
from jax.experimental.pallas import tpu as pltpu

# ---------------- model dimensions (small, consistent with the forward) ----
PATCH = 8          # patch-embed "conv" kernel / stride
EMBED = 32         # prompt / image embedding dim
ENC_HID = 64       # encoder / decoder MLP hidden
UP = 8             # upscaled-embedding channel dim (hypernetwork output)


# ============================ small helpers =================================
def _const_spec(shape):
    zeros = (0,) * len(shape)
    return pl.BlockSpec(shape, lambda i, _z=zeros: _z)


def _pack_cols(arrays, dtype, align=128):
    """Column-concatenate 2-D arrays into one slab; every segment start is
    aligned to a 128-lane boundary so in-kernel static slices stay within a
    lane tile (cheap masked loads, no lane rotation).
    Returns (slab, [(start, width), ...])."""
    parts, offs, col = [], [], 0
    for a in arrays:
        w = int(a.shape[1])
        pad = (-w) % align
        parts.append(jnp.pad(a.astype(jnp.float32), ((0, 0), (0, pad))).astype(dtype))
        offs.append((col, w))
        col += w + pad
    return jnp.concatenate(parts, axis=1), offs


def bilinear_matrix(out_size, in_size):
    """Interpolation matrix matching F.interpolate(mode='bilinear',
    align_corners=False) along one axis."""
    scale = in_size / out_size
    i = jnp.arange(out_size, dtype=jnp.float32)
    src = jnp.maximum(scale * (i + 0.5) - 0.5, 0.0)
    i0 = jnp.clip(jnp.floor(src).astype(jnp.int32), 0, in_size - 1)
    i1 = jnp.minimum(i0 + 1, in_size - 1)
    w1 = src - i0.astype(jnp.float32)
    w0 = 1.0 - w1
    m = jnp.zeros((out_size, in_size), jnp.float32)
    rows = jnp.arange(out_size)
    m = m.at[rows, i0].add(w0)
    m = m.at[rows, i1].add(w1)
    return m


def pe_encoding(gauss, coords01):
    """Random Fourier positional encoding (SAM PositionEmbeddingRandom)."""
    c = 2.0 * coords01 - 1.0
    c = c @ gauss                     # (..., EMBED//2)
    c = 2.0 * math.pi * c
    return jnp.concatenate([jnp.sin(c), jnp.cos(c)], axis=-1)   # (..., EMBED)


# ============================ the fused kernel ==============================
def _sam_fused_kernel(patch_ref, tok_ref,
                      wp_ref, wd_ref, wh_ref, b_ref, kvadd_ref, kt_ref,
                      masks_ref, iou_ref,
                      *, nb, off_d, off_h, off_b):
    """Fused image encoder + prompt/mask decoder + composed bilinear upsample
    for one image.

    Token rows are type-major: [0:nb]=iou, [nb:2nb]=mask, [2nb:3nb]=corner0,
    [3nb:4nb]=corner1.  All token ops are row-wise over a shared image K/V,
    so this is equivalent to per-prompt processing.
    """
    bf, f32 = jnp.bfloat16, jnp.float32
    D, UPC = EMBED, UP

    def mm(a, w):                       # bf16 MXU operands, f32 accumulation
        return jnp.dot(a.astype(bf), w, preferred_element_type=f32)

    def mm_t(a, b_):                    # contract last dims (no XLU transpose)
        return lax.dot_general(a.astype(bf), b_.astype(bf),
                               (((1,), (1,)), ((), ())),
                               preferred_element_type=f32)

    def wd(name):
        s, w = off_d[name]
        return wd_ref[:, s:s + w]

    def wh(name):
        s, w = off_h[name]
        return wh_ref[:, s:s + w]

    def bb(name):
        s, w = off_b[name]
        return b_ref[:, s:s + w]

    # ---- image encoder: patch embed -> MLP(+residual) -> neck ----
    x = mm(patch_ref[0], wp_ref[...]) + bb("patch_b")              # (S, D)
    h = jnp.maximum(mm(x, wd("enc_w1")) + bb("enc_b1"), 0.0)
    x = x + mm(h, wh("enc_w2")) + bb("enc_b2")
    src = mm(x, wd("neck_w")) + bb("neck_b")       # no_mask_embed folded into bias

    # ---- token -> image cross attention (single head) ----
    tok = tok_ref[0]                                               # (4nb, D) f32
    q = mm(tok, wd("wq")) + bb("bq")                               # 1/sqrt(D) folded
    kvu = mm(src, wd("wkvu")) + kvadd_ref[...]                     # (S, 2D+UP)
    k = kvu[:, :D]                                                 # pos@wk+bk folded
    v = kvu[:, D:2 * D]
    up_feat = jnp.maximum(kvu[:, 2 * D:2 * D + UPC], 0.0)          # (S, UP)

    s = mm_t(q, k)                                                 # (4nb, S)
    s = s - jnp.max(s, axis=-1, keepdims=True)
    p = jnp.exp(s)
    p = p * pl.reciprocal(jnp.sum(p, axis=-1, keepdims=True), approx=True)
    attn = mm(p, v.astype(bf))                                     # (4nb, D)

    tok = tok + mm(attn, wd("wo")) + bb("bo")
    h2 = jnp.maximum(mm(tok, wd("mlp_w1")) + bb("mlp_b1"), 0.0)
    tok = tok + mm(h2, wh("mlp_w2")) + bb("mlp_b2")

    # ---- hypernetwork + IoU-head first layers fused over all token rows ----
    hi = jnp.maximum(mm(tok, wd("w_hi1")) + bb("b_hi1"), 0.0)      # (4nb, 2D)
    hyper = mm(hi[nb:2 * nb, :D], wd("hyp_w2")) + bb("hyp_b2")     # (nb, UP)
    iou_ref[0] = mm(hi[0:nb, D:2 * D], wd("iou_w2")) + bb("iou_b2")  # (nb, 1)

    # ---- low-res masks + composed (2x-up ∘ bilinear-to-(H,W)) upsample ----
    f_low = mm_t(hyper, up_feat)                                   # (nb, S)
    masks_ref[0] = mm(f_low, kt_ref[...])                          # (nb, H*W) lane-dense


# ============================ model builder =================================
def build_sam(params, image_size, num_boxes):
    """Fold constants and pack weight slabs ONCE; return a jitted
    (images, boxes) -> (masks, ious, bin_masks) function."""
    H, W = image_size
    He, We = H // PATCH, W // PATCH
    S, D, HW = He * We, EMBED, H * W
    NB, T4 = num_boxes, 4 * num_boxes
    C = 3
    CKK = C * PATCH * PATCH
    bf, f32 = jnp.bfloat16, jnp.float32
    scale = 1.0 / math.sqrt(D)

    # dense positional encoding over the (He, We) feature grid
    ys = (jnp.arange(He, dtype=f32) + 0.5) / He
    xs = (jnp.arange(We, dtype=f32) + 0.5) / We
    gx, gy = jnp.meshgrid(xs, ys, indexing="xy")
    pos = pe_encoding(params["pe_gauss"], jnp.stack([gx, gy], -1)).reshape(S, D)

    # --- trace-time constant folds ---
    neck_b_eff = params["neck_b"] + params["no_mask_embed"]     # dense no-mask prompt
    wq_s, bq_s = params["wq"] * scale, params["bq"] * scale     # fold 1/sqrt(D)
    kv_add = jnp.concatenate(                                   # [pos@wk+bk | bv | up_b]
        [pos @ params["wk"] + params["bk"],
         jnp.broadcast_to(params["bv"][None, :], (S, D)),
         jnp.broadcast_to(params["up_b"][None, :], (S, UP))], axis=-1).astype(f32)

    wkvu = jnp.concatenate([params["wk"], params["wv"], params["up_w"]], axis=1)
    w_hi1 = jnp.concatenate([params["hyp_w1"], params["iou_w1"]], axis=1)
    b_hi1 = jnp.concatenate([params["hyp_b1"], params["iou_b1"]])

    # --- packed weight / bias slabs (segment starts 128-lane aligned) ---
    d_names = ["enc_w1", "neck_w", "wq", "wkvu", "wo", "mlp_w1",
               "w_hi1", "hyp_w2", "iou_w2"]
    d_arrays = [params["enc_w1"], params["neck_w"], wq_s, wkvu, params["wo"],
                params["mlp_w1"], w_hi1, params["hyp_w2"], params["iou_w2"]]
    wd_slab, d_offs = _pack_cols(d_arrays, bf)
    off_d = dict(zip(d_names, d_offs))

    wh_slab, h_offs = _pack_cols([params["enc_w2"], params["mlp_w2"]], bf)
    off_h = dict(zip(["enc_w2", "mlp_w2"], h_offs))

    b_names = ["patch_b", "enc_b1", "enc_b2", "neck_b", "bq", "bo",
               "mlp_b1", "mlp_b2", "b_hi1", "hyp_b2", "iou_b2"]
    b_arrays = [params["patch_b"], params["enc_b1"], params["enc_b2"], neck_b_eff,
                bq_s, params["bo"], params["mlp_b1"], params["mlp_b2"],
                b_hi1, params["hyp_b2"], params["iou_b2"]]
    b_slab, b_offs = _pack_cols([a.reshape(1, -1) for a in b_arrays], f32)
    off_b = dict(zip(b_names, b_offs))

    wp = params["patch_w"].astype(bf)

    # composed (2x upscale ∘ final bilinear-to-(H,W)) operator, Kronecker form:
    # masks[n] = Wr @ F_n @ Wc^T  <=>  masks_flat[n] = f_low[n] @ k_t
    wr = bilinear_matrix(H, 2 * He) @ bilinear_matrix(2 * He, He)    # (H, He)
    wc = bilinear_matrix(W, 2 * We) @ bilinear_matrix(2 * We, We)    # (W, We)
    k_t = jnp.einsum("ih,jw->hwij", wr, wc).reshape(S, HW).astype(bf)

    pe_gauss = params["pe_gauss"]
    point_embed = params["point_embed"]
    iou_token, mask_token = params["iou_token"], params["mask_token"]

    kern = functools.partial(_sam_fused_kernel, nb=NB,
                             off_d=off_d, off_h=off_h, off_b=off_b)

    def fused_call(patches, tokens):
        B = patches.shape[0]
        in_specs = [
            pl.BlockSpec((1, S, CKK), lambda i: (i, 0, 0)),   # patches (per image)
            pl.BlockSpec((1, T4, D), lambda i: (i, 0, 0)),    # tokens (per image)
            _const_spec(wp.shape), _const_spec(wd_slab.shape),
            _const_spec(wh_slab.shape), _const_spec(b_slab.shape),
            _const_spec(kv_add.shape), _const_spec(k_t.shape),
        ]
        out_specs = (pl.BlockSpec((1, NB, HW), lambda i: (i, 0, 0)),
                     pl.BlockSpec((1, NB, 1), lambda i: (i, 0, 0)))
        out_shape = (jax.ShapeDtypeStruct((B, NB, HW), f32),
                     jax.ShapeDtypeStruct((B, NB, 1), f32))
        return pl.pallas_call(
            kern, out_shape=out_shape, grid=(B,),
            in_specs=in_specs, out_specs=out_specs,
            compiler_params=pltpu.CompilerParams(
                dimension_semantics=("parallel",)),   # 2-way split on v7x's 2 TCs
        )(patches, tokens, wp, wd_slab, wh_slab, b_slab, kv_add, k_t)

    @jax.jit
    def core(images, boxes):
        B = images.shape[0]
        # patch extraction (pure layout; fused by XLA), cast once to bf16
        patches = (images.reshape(B, C, He, PATCH, We, PATCH)
                   .transpose(0, 2, 4, 1, 3, 5)
                   .reshape(B, S, CKK)).astype(bf)

        # prompt encoder: box corners -> random-Fourier PE + corner embeddings
        corners = boxes.reshape(B, NB, 2, 2) + 0.5
        norm = corners / jnp.array([W, H], f32)
        emb = pe_encoding(pe_gauss, norm)                          # (B, NB, 2, D)
        emb = emb.at[:, :, 0, :].add(point_embed[2])
        emb = emb.at[:, :, 1, :].add(point_embed[3])

        # tokens, type-major: [iou xNB, mask xNB, corner0 xNB, corner1 xNB]
        iou_t = jnp.broadcast_to(iou_token[None, None], (B, NB, D))
        msk_t = jnp.broadcast_to(mask_token[None, None], (B, NB, D))
        tokens = jnp.concatenate(
            [iou_t, msk_t, emb[:, :, 0, :], emb[:, :, 1, :]], axis=1)  # (B,4NB,D)

        masks_flat, ious = fused_call(patches, tokens)
        masks = masks_flat.reshape(B, NB, H, W)
        bin_masks = (masks > 0.5).astype(jnp.uint8)   # spec: torch masks > 0.5
        return masks, ious, bin_masks

    return core


# ============================ parameters ====================================
def init_params(key):
    ks = iter(jax.random.split(key, 40))

    def nrm(shape, scale=0.02):
        return scale * jax.random.normal(next(ks), shape, jnp.float32)

    C = 3
    return {
        # image encoder
        "patch_w": nrm((C * PATCH * PATCH, EMBED)), "patch_b": nrm((EMBED,)),
        "enc_w1": nrm((EMBED, ENC_HID)), "enc_b1": nrm((ENC_HID,)),
        "enc_w2": nrm((ENC_HID, EMBED)), "enc_b2": nrm((EMBED,)),
        "neck_w": nrm((EMBED, EMBED)), "neck_b": nrm((EMBED,)),
        # prompt encoder
        "pe_gauss": jax.random.normal(next(ks), (2, EMBED // 2), jnp.float32),
        "point_embed": nrm((4, EMBED)),
        "no_mask_embed": nrm((EMBED,)),
        # mask decoder
        "iou_token": nrm((EMBED,)), "mask_token": nrm((EMBED,)),
        "wq": nrm((EMBED, EMBED)), "bq": nrm((EMBED,)),
        "wk": nrm((EMBED, EMBED)), "bk": nrm((EMBED,)),
        "wv": nrm((EMBED, EMBED)), "bv": nrm((EMBED,)),
        "wo": nrm((EMBED, EMBED)), "bo": nrm((EMBED,)),
        "mlp_w1": nrm((EMBED, ENC_HID)), "mlp_b1": nrm((ENC_HID,)),
        "mlp_w2": nrm((ENC_HID, EMBED)), "mlp_b2": nrm((EMBED,)),
        "up_w": nrm((EMBED, UP)), "up_b": nrm((UP,)),
        "hyp_w1": nrm((EMBED, EMBED)), "hyp_b1": nrm((EMBED,)),
        "hyp_w2": nrm((EMBED, UP)), "hyp_b2": nrm((UP,)),
        "iou_w1": nrm((EMBED, EMBED)), "iou_b1": nrm((EMBED,)),
        "iou_w2": nrm((EMBED, 1)), "iou_b2": nrm((1,)),
    }


# ============================ SAMModel.forward ==============================
def sam_forward(core, images, targets):
    """Mirrors SAMModel.forward: returns (None, pred_masks, ious, outputs)."""
    B = images.shape[0]
    # TODO(synk): assumes every target has the same number of boxes so the
    # per-image decode batches into one kernel; ragged prompts would need padding.
    boxes = jnp.stack([jnp.asarray(t["boxes"], jnp.float32) for t in targets])
    masks, ious, bin_masks = core(images, boxes)

    pred_masks, iou_list, outputs = [], [], []
    for b in range(B):
        pred_masks.append(masks[b])                          # (NB, H, W)
        iou_list.append(ious[b])                             # (NB, 1)
        outputs.append(dict(
            masks=bin_masks[b],                              # uint8 (NB, H, W)
            scores=ious[b][:, 0].astype(jnp.float32),
            # TODO(synk): PyTorch uses int64 labels; int64 needs jax x64 mode.
            labels=jnp.asarray(targets[b]["labels"]).astype(jnp.int32),
            boxes=jnp.asarray(targets[b]["boxes"]).astype(jnp.float32),
        ))
    return None, pred_masks, iou_list, outputs


# ================================ main ======================================
if __name__ == "__main__":
    key = jax.random.PRNGKey(0)
    k_img, k_box, k_par = jax.random.split(key, 3)

    B, C, H, W = 2, 3, 32, 32
    N_BOXES = 2

    images = jax.random.normal(k_img, (B, C, H, W), jnp.float32)
    targets = []
    for b in range(B):
        kb = jax.random.fold_in(k_box, b)
        xy0 = jax.random.uniform(kb, (N_BOXES, 2), minval=0.0, maxval=W / 2)
        wh = jax.random.uniform(jax.random.fold_in(kb, 1), (N_BOXES, 2),
                                minval=4.0, maxval=W / 2)
        boxes = jnp.concatenate([xy0, jnp.minimum(xy0 + wh, W - 1.0)], axis=-1)
        labels = jnp.arange(1, N_BOXES + 1, dtype=jnp.int32)
        targets.append({"boxes": boxes.astype(jnp.float32), "labels": labels})

    params = init_params(k_par)
    core = build_sam(params, image_size=(H, W), num_boxes=N_BOXES)

    loss_none, pred_masks, ious, outputs = sam_forward(core, images, targets)
    jax.block_until_ready((pred_masks, ious, outputs))

    assert pred_masks[0].shape == (N_BOXES, H, W)
    assert ious[0].shape == (N_BOXES, 1)
    assert outputs[0]["masks"].dtype == jnp.uint8
    print("KERNEL_OK")
</pallas_src>

<mosaic_0001>
module attributes {stable_mosaic.version = 11 : i64} {
  func.func @_sam_fused_kernel(%arg0: i32, %arg1: memref<1x16x192xbf16, #tpu.memory_space<vmem>>, %arg2: memref<1x8x32xf32, #tpu.memory_space<vmem>>, %arg3: memref<192x32xbf16, #tpu.memory_space<vmem>>, %arg4: memref<32x1152xbf16, #tpu.memory_space<vmem>>, %arg5: memref<64x256xbf16, #tpu.memory_space<vmem>>, %arg6: memref<1x1408xf32, #tpu.memory_space<vmem>>, %arg7: memref<16x72xf32, #tpu.memory_space<vmem>>, %arg8: memref<16x1024xbf16, #tpu.memory_space<vmem>>, %arg9: memref<1x2x1024xf32, #tpu.memory_space<vmem>>, %arg10: memref<1x2x1xf32, #tpu.memory_space<vmem>>) attributes {dimension_semantics = [#tpu.dimension_semantics<parallel>], iteration_bounds = array<i64: 2>, scalar_prefetch = 0 : i64, scratch_operands = 0 : i64, tpu.core_type = #tpu.core_type<tc>, window_params = [{transform_indices = @transform_0, window_bounds = array<i64: 1, 16, 192>}, {transform_indices = @transform_1, window_bounds = array<i64: 1, 8, 32>}, {pipeline_mode = #tpu.pipeline_mode<synchronous>, transform_indices = @transform_2, window_bounds = array<i64: 192, 32>}, {pipeline_mode = #tpu.pipeline_mode<synchronous>, transform_indices = @transform_3, window_bounds = array<i64: 32, 1152>}, {pipeline_mode = #tpu.pipeline_mode<synchronous>, transform_indices = @transform_4, window_bounds = array<i64: 64, 256>}, {pipeline_mode = #tpu.pipeline_mode<synchronous>, transform_indices = @transform_5, window_bounds = array<i64: 1, 1408>}, {pipeline_mode = #tpu.pipeline_mode<synchronous>, transform_indices = @transform_6, window_bounds = array<i64: 16, 72>}, {pipeline_mode = #tpu.pipeline_mode<synchronous>, transform_indices = @transform_7, window_bounds = array<i64: 16, 1024>}, {transform_indices = @transform_8, window_bounds = array<i64: 1, 2, 1024>}, {transform_indices = @transform_9, window_bounds = array<i64: 1, 2, 1>}]} {
    %c0 = arith.constant 0 : index
    %c0_0 = arith.constant 0 : index
    %c0_1 = arith.constant 0 : index
    %0 = vector.load %arg1[%c0, %c0_0, %c0_1] : memref<1x16x192xbf16, #tpu.memory_space<vmem>>, vector<1x16x192xbf16>
    %1 = vector.shape_cast %0 : vector<1x16x192xbf16> to vector<16x192xbf16>
    %c0_2 = arith.constant 0 : index
    %c0_3 = arith.constant 0 : index
    %2 = vector.load %arg3[%c0_2, %c0_3] : memref<192x32xbf16, #tpu.memory_space<vmem>>, vector<192x32xbf16>
    %cst = arith.constant dense<0.000000e+00> : vector<16x32xf32>
    %3 = tpu.matmul %1, %2, %cst {dimension_numbers = #tpu.dot_dimension_numbers<[1], [0], [0], [1], [0, 0, 1, 1], [], []>} : vector<16x192xbf16>, vector<192x32xbf16>, vector<16x32xf32> -> vector<16x32xf32>
    %c0_4 = arith.constant 0 : index
    %c0_5 = arith.constant 0 : index
    %4 = vector.load %arg6[%c0_4, %c0_5] : memref<1x1408xf32, #tpu.memory_space<vmem>>, vector<1x32xf32>
    %5 = vector.broadcast %4 : vector<1x32xf32> to vector<16x32xf32>
    %6 = arith.addf %3, %5 : vector<16x32xf32>
    %c0_6 = arith.constant 0 : index
    %c0_7 = arith.constant 0 : index
    %7 = vector.load %arg4[%c0_6, %c0_7] : memref<32x1152xbf16, #tpu.memory_space<vmem>>, vector<32x64xbf16>
    %8 = arith.truncf %6 : vector<16x32xf32> to vector<16x32xbf16>
    %cst_8 = arith.constant dense<0.000000e+00> : vector<16x64xf32>
    %9 = tpu.matmul %8, %7, %cst_8 {dimension_numbers = #tpu.dot_dimension_numbers<[1], [0], [0], [1], [0, 0, 1, 1], [], []>} : vector<16x32xbf16>, vector<32x64xbf16>, vector<16x64xf32> -> vector<16x64xf32>
    %c0_9 = arith.constant 0 : index
    %c128 = arith.constant 128 : index
    %10 = vector.load %arg6[%c0_9, %c128] : memref<1x1408xf32, #tpu.memory_space<vmem>>, vector<1x64xf32>
    %11 = vector.broadcast %10 : vector<1x64xf32> to vector<16x64xf32>
    %12 = arith.addf %9, %11 : vector<16x64xf32>
    %cst_10 = arith.constant 0.000000e+00 : f32
    %13 = vector.broadcast %cst_10 : f32 to vector<16x64xf32>
    %14 = arith.maximumf %12, %13 : vector<16x64xf32>
    %c0_11 = arith.constant 0 : index
    %c0_12 = arith.constant 0 : index
    %15 = vector.load %arg5[%c0_11, %c0_12] : memref<64x256xbf16, #tpu.memory_space<vmem>>, vector<64x32xbf16>
    %16 = arith.truncf %14 : vector<16x64xf32> to vector<16x64xbf16>
    %cst_13 = arith.constant dense<0.000000e+00> : vector<16x32xf32>
    %17 = tpu.matmul %16, %15, %cst_13 {dimension_numbers = #tpu.dot_dimension_numbers<[1], [0], [0], [1], [0, 0, 1, 1], [], []>} : vector<16x64xbf16>, vector<64x32xbf16>, vector<16x32xf32> -> vector<16x32xf32>
    %18 = arith.addf %6, %17 : vector<16x32xf32>
    %c0_14 = arith.constant 0 : index
    %c256 = arith.constant 256 : index
    %19 = vector.load %arg6[%c0_14, %c256] : memref<1x1408xf32, #tpu.memory_space<vmem>>, vector<1x32xf32>
    %20 = vector.broadcast %19 : vector<1x32xf32> to vector<16x32xf32>
    %21 = arith.addf %18, %20 : vector<16x32xf32>
    %c0_15 = arith.constant 0 : index
    %c128_16 = arith.constant 128 : index
    %22 = vector.load %arg4[%c0_15, %c128_16] : memref<32x1152xbf16, #tpu.memory_space<vmem>>, vector<32x32xbf16>
    %23 = arith.truncf %21 : vector<16x32xf32> to vector<16x32xbf16>
    %cst_17 = arith.constant dense<0.000000e+00> : vector<16x32xf32>
    %24 = tpu.matmul %23, %22, %cst_17 {dimension_numbers = #tpu.dot_dimension_numbers<[1], [0], [0], [1], [0, 0, 1, 1], [], []>} : vector<16x32xbf16>, vector<32x32xbf16>, vector<16x32xf32> -> vector<16x32xf32>
    %c0_18 = arith.constant 0 : index
    %c384 = arith.constant 384 : index
    %25 = vector.load %arg6[%c0_18, %c384] : memref<1x1408xf32, #tpu.memory_space<vmem>>, vector<1x32xf32>
    %26 = vector.broadcast %25 : vector<1x32xf32> to vector<16x32xf32>
    %27 = arith.addf %24, %26 : vector<16x32xf32>
    %c0_19 = arith.constant 0 : index
    %c0_20 = arith.constant 0 : index
    %c0_21 = arith.constant 0 : index
    %28 = vector.load %arg2[%c0_19, %c0_20, %c0_21] : memref<1x8x32xf32, #tpu.memory_space<vmem>>, vector<1x8x32xf32>
    %29 = vector.shape_cast %28 : vector<1x8x32xf32> to vector<8x32xf32>
    %c0_22 = arith.constant 0 : index
    %c256_23 = arith.constant 256 : index
    %30 = vector.load %arg4[%c0_22, %c256_23] : memref<32x1152xbf16, #tpu.memory_space<vmem>>, vector<32x32xbf16>
    %31 = arith.truncf %29 : vector<8x32xf32> to vector<8x32xbf16>
    %cst_24 = arith.constant dense<0.000000e+00> : vector<8x32xf32>
    %32 = tpu.matmul %31, %30, %cst_24 {dimension_numbers = #tpu.dot_dimension_numbers<[1], [0], [0], [1], [0, 0, 1, 1], [], []>} : vector<8x32xbf16>, vector<32x32xbf16>, vector<8x32xf32> -> vector<8x32xf32>
    %c0_25 = arith.constant 0 : index
    %c512 = arith.constant 512 : index
    %33 = vector.load %arg6[%c0_25, %c512] : memref<1x1408xf32, #tpu.memory_space<vmem>>, vector<1x32xf32>
    %34 = vector.broadcast %33 : vector<1x32xf32> to vector<8x32xf32>
    %35 = arith.addf %32, %34 : vector<8x32xf32>
    %c0_26 = arith.constant 0 : index
    %c384_27 = arith.constant 384 : index
    %36 = vector.load %arg4[%c0_26, %c384_27] : memref<32x1152xbf16, #tpu.memory_space<vmem>>, vector<32x72xbf16>
    %37 = arith.truncf %27 : vector<16x32xf32> to vector<16x32xbf16>
    %cst_28 = arith.constant dense<0.000000e+00> : vector<16x72xf32>
    %38 = tpu.matmul %37, %36, %cst_28 {dimension_numbers = #tpu.dot_dimension_numbers<[1], [0], [0], [1], [0, 0, 1, 1], [], []>} : vector<16x32xbf16>, vector<32x72xbf16>, vector<16x72xf32> -> vector<16x72xf32>
    %c0_29 = arith.constant 0 : index
    %c0_30 = arith.constant 0 : index
    %39 = vector.load %arg7[%c0_29, %c0_30] : memref<16x72xf32, #tpu.memory_space<vmem>>, vector<16x72xf32>
    %40 = arith.addf %38, %39 : vector<16x72xf32>
    %41 = vector.extract_strided_slice %40 {offsets = [0, 0], sizes = [16, 32], strides = [1, 1]} : vector<16x72xf32> to vector<16x32xf32>
    %42 = vector.extract_strided_slice %40 {offsets = [0, 32], sizes = [16, 32], strides = [1, 1]} : vector<16x72xf32> to vector<16x32xf32>
    %43 = vector.extract_strided_slice %40 {offsets = [0, 64], sizes = [16, 8], strides = [1, 1]} : vector<16x72xf32> to vector<16x8xf32>
    %cst_31 = arith.constant 0.000000e+00 : f32
    %44 = vector.broadcast %cst_31 : f32 to vector<16x8xf32>
    %45 = arith.maximumf %43, %44 : vector<16x8xf32>
    %46 = arith.truncf %35 : vector<8x32xf32> to vector<8x32xbf16>
    %47 = arith.truncf %41 : vector<16x32xf32> to vector<16x32xbf16>
    %cst_32 = arith.constant dense<0.000000e+00> : vector<8x16xf32>
    %48 = tpu.matmul %46, %47, %cst_32 {dimension_numbers = #tpu.dot_dimension_numbers<[1], [1], [0], [0], [0, 0, 1, 0], [], []>} : vector<8x32xbf16>, vector<16x32xbf16>, vector<8x16xf32> -> vector<8x16xf32>
    %cst_33 = arith.constant dense<0xFF800000> : vector<8xf32>
    %49 = vector.multi_reduction <maximumf>, %48, %cst_33 [1] : vector<8x16xf32> to vector<8xf32>
    %50 = vector.shape_cast %49 : vector<8xf32> to vector<8x1xf32>
    %51 = vector.broadcast %50 : vector<8x1xf32> to vector<8x16xf32>
    %52 = arith.subf %48, %51 : vector<8x16xf32>
    %53 = math.exp %52 : vector<8x16xf32>
    %cst_34 = arith.constant dense<0.000000e+00> : vector<8xf32>
    %54 = vector.multi_reduction <add>, %53, %cst_34 [1] : vector<8x16xf32> to vector<8xf32>
    %55 = vector.shape_cast %54 : vector<8xf32> to vector<8x1xf32>
    %56 = tpu.reciprocal %55 {approx = true} : vector<8x1xf32> -> vector<8x1xf32>
    %57 = vector.broadcast %56 : vector<8x1xf32> to vector<8x16xf32>
    %58 = arith.mulf %53, %57 : vector<8x16xf32>
    %59 = arith.truncf %42 : vector<16x32xf32> to vector<16x32xbf16>
    %60 = arith.truncf %58 : vector<8x16xf32> to vector<8x16xbf16>
    %cst_35 = arith.constant dense<0.000000e+00> : vector<8x32xf32>
    %61 = tpu.matmul %60, %59, %cst_35 {dimension_numbers = #tpu.dot_dimension_numbers<[1], [0], [0], [1], [0, 0, 1, 1], [], []>} : vector<8x16xbf16>, vector<16x32xbf16>, vector<8x32xf32> -> vector<8x32xf32>
    %c0_36 = arith.constant 0 : index
    %c512_37 = arith.constant 512 : index
    %62 = vector.load %arg4[%c0_36, %c512_37] : memref<32x1152xbf16, #tpu.memory_space<vmem>>, vector<32x32xbf16>
    %63 = arith.truncf %61 : vector<8x32xf32> to vector<8x32xbf16>
    %cst_38 = arith.constant dense<0.000000e+00> : vector<8x32xf32>
    %64 = tpu.matmul %63, %62, %cst_38 {dimension_numbers = #tpu.dot_dimension_numbers<[1], [0], [0], [1], [0, 0, 1, 1], [], []>} : vector<8x32xbf16>, vector<32x32xbf16>, vector<8x32xf32> -> vector<8x32xf32>
    %65 = arith.addf %29, %64 : vector<8x32xf32>
    %c0_39 = arith.constant 0 : index
    %c640 = arith.constant 640 : index
    %66 = vector.load %arg6[%c0_39, %c640] : memref<1x1408xf32, #tpu.memory_space<vmem>>, vector<1x32xf32>
    %67 = vector.broadcast %66 : vector<1x32xf32> to vector<8x32xf32>
    %68 = arith.addf %65, %67 : vector<8x32xf32>
    %c0_40 = arith.constant 0 : index
    %c640_41 = arith.constant 640 : index
    %69 = vector.load %arg4[%c0_40, %c640_41] : memref<32x1152xbf16, #tpu.memory_space<vmem>>, vector<32x64xbf16>
    %70 = arith.truncf %68 : vector<8x32xf32> to vector<8x32xbf16>
    %cst_42 = arith.constant dense<0.000000e+00> : vector<8x64xf32>
    %71 = tpu.matmul %70, %69, %cst_42 {dimension_numbers = #tpu.dot_dimension_numbers<[1], [0], [0], [1], [0, 0, 1, 1], [], []>} : vector<8x32xbf16>, vector<32x64xbf16>, vector<8x64xf32> -> vector<8x64xf32>
    %c0_43 = arith.constant 0 : index
    %c768 = arith.constant 768 : index
    %72 = vector.load %arg6[%c0_43, %c768] : memref<1x1408xf32, #tpu.memory_space<vmem>>, vector<1x64xf32>
    %73 = vector.broadcast %72 : vector<1x64xf32> to vector<8x64xf32>
    %74 = arith.addf %71, %73 : vector<8x64xf32>
    %cst_44 = arith.constant 0.000000e+00 : f32
    %75 = vector.broadcast %cst_44 : f32 to vector<8x64xf32>
    %76 = arith.maximumf %74, %75 : vector<8x64xf32>
    %c0_45 = arith.constant 0 : index
    %c128_46 = arith.constant 128 : index
    %77 = vector.load %arg5[%c0_45, %c128_46] : memref<64x256xbf16, #tpu.memory_space<vmem>>, vector<64x32xbf16>
    %78 = arith.truncf %76 : vector<8x64xf32> to vector<8x64xbf16>
    %cst_47 = arith.constant dense<0.000000e+00> : vector<8x32xf32>
    %79 = tpu.matmul %78, %77, %cst_47 {dimension_numbers = #tpu.dot_dimension_numbers<[1], [0], [0], [1], [0, 0, 1, 1], [], []>} : vector<8x64xbf16>, vector<64x32xbf16>, vector<8x32xf32> -> vector<8x32xf32>
    %80 = arith.addf %68, %79 : vector<8x32xf32>
    %c0_48 = arith.constant 0 : index
    %c896 = arith.constant 896 : index
    %81 = vector.load %arg6[%c0_48, %c896] : memref<1x1408xf32, #tpu.memory_space<vmem>>, vector<1x32xf32>
    %82 = vector.broadcast %81 : vector<1x32xf32> to vector<8x32xf32>
    %83 = arith.addf %80, %82 : vector<8x32xf32>
    %c0_49 = arith.constant 0 : index
    %c768_50 = arith.constant 768 : index
    %84 = vector.load %arg4[%c0_49, %c768_50] : memref<32x1152xbf16, #tpu.memory_space<vmem>>, vector<32x64xbf16>
    %85 = arith.truncf %83 : vector<8x32xf32> to vector<8x32xbf16>
    %cst_51 = arith.constant dense<0.000000e+00> : vector<8x64xf32>
    %86 = tpu.matmul %85, %84, %cst_51 {dimension_numbers = #tpu.dot_dimension_numbers<[1], [0], [0], [1], [0, 0, 1, 1], [], []>} : vector<8x32xbf16>, vector<32x64xbf16>, vector<8x64xf32> -> vector<8x64xf32>
    %c0_52 = arith.constant 0 : index
    %c1024 = arith.constant 1024 : index
    %87 = vector.load %arg6[%c0_52, %c1024] : memref<1x1408xf32, #tpu.memory_space<vmem>>, vector<1x64xf32>
    %88 = vector.broadcast %87 : vector<1x64xf32> to vector<8x64xf32>
    %89 = arith.addf %86, %88 : vector<8x64xf32>
    %cst_53 = arith.constant 0.000000e+00 : f32
    %90 = vector.broadcast %cst_53 : f32 to vector<8x64xf32>
    %91 = arith.maximumf %89, %90 : vector<8x64xf32>
    %92 = vector.extract_strided_slice %91 {offsets = [2, 0], sizes = [2, 32], strides = [1, 1]} : vector<8x64xf32> to vector<2x32xf32>
    %c0_54 = arith.constant 0 : index
    %c896_55 = arith.constant 896 : index
    %93 = vector.load %arg4[%c0_54, %c896_55] : memref<32x1152xbf16, #tpu.memory_space<vmem>>, vector<32x8xbf16>
    %94 = arith.truncf %92 : vector<2x32xf32> to vector<2x32xbf16>
    %cst_56 = arith.constant dense<0.000000e+00> : vector<2x8xf32>
    %95 = tpu.matmul %94, %93, %cst_56 {dimension_numbers = #tpu.dot_dimension_numbers<[1], [0], [0], [1], [0, 0, 1, 1], [], []>} : vector<2x32xbf16>, vector<32x8xbf16>, vector<2x8xf32> -> vector<2x8xf32>
    %c0_57 = arith.constant 0 : index
    %c1152 = arith.constant 1152 : index
    %96 = vector.load %arg6[%c0_57, %c1152] : memref<1x1408xf32, #tpu.memory_space<vmem>>, vector<1x8xf32>
    %97 = vector.broadcast %96 : vector<1x8xf32> to vector<2x8xf32>
    %98 = arith.addf %95, %97 : vector<2x8xf32>
    %99 = vector.extract_strided_slice %91 {offsets = [0, 32], sizes = [2, 32], strides = [1, 1]} : vector<8x64xf32> to vector<2x32xf32>
    %c0_58 = arith.constant 0 : index
    %c1024_59 = arith.constant 1024 : index
    %100 = vector.load %arg4[%c0_58, %c1024_59] : memref<32x1152xbf16, #tpu.memory_space<vmem>>, vector<32x1xbf16>
    %101 = arith.truncf %99 : vector<2x32xf32> to vector<2x32xbf16>
    %cst_60 = arith.constant dense<0.000000e+00> : vector<2x1xf32>
    %102 = tpu.matmul %101, %100, %cst_60 {dimension_numbers = #tpu.dot_dimension_numbers<[1], [0], [0], [1], [0, 0, 1, 1], [], []>} : vector<2x32xbf16>, vector<32x1xbf16>, vector<2x1xf32> -> vector<2x1xf32>
    %c0_61 = arith.constant 0 : index
    %c1280 = arith.constant 1280 : index
    %103 = vector.load %arg6[%c0_61, %c1280] : memref<1x1408xf32, #tpu.memory_space<vmem>>, vector<1x1xf32>
    %104 = vector.broadcast %103 : vector<1x1xf32> to vector<2x1xf32>
    %105 = arith.addf %102, %104 : vector<2x1xf32>
    %c0_62 = arith.constant 0 : index
    %c0_63 = arith.constant 0 : index
    %c0_64 = arith.constant 0 : index
    %106 = vector.load %arg10[%c0_62, %c0_63, %c0_64] : memref<1x2x1xf32, #tpu.memory_space<vmem>>, vector<1x2x1xf32>
    %107 = vector.shape_cast %106 : vector<1x2x1xf32> to vector<2x1xf32>
    %108 = vector.shape_cast %105 : vector<2x1xf32> to vector<1x2x1xf32>
    tpu.vector_store %arg10[%c0_62, %c0_63, %c0_64], %108 {strides = array<i32>} : memref<1x2x1xf32, #tpu.memory_space<vmem>>, vector<1x2x1xf32>,
    %109 = arith.truncf %98 : vector<2x8xf32> to vector<2x8xbf16>
    %110 = arith.truncf %45 : vector<16x8xf32> to vector<16x8xbf16>
    %cst_65 = arith.constant dense<0.000000e+00> : vector<2x16xf32>
    %111 = tpu.matmul %109, %110, %cst_65 {dimension_numbers = #tpu.dot_dimension_numbers<[1], [1], [0], [0], [0, 0, 1, 0], [], []>} : vector<2x8xbf16>, vector<16x8xbf16>, vector<2x16xf32> -> vector<2x16xf32>
    %c0_66 = arith.constant 0 : index
    %c0_67 = arith.constant 0 : index
    %112 = vector.load %arg8[%c0_66, %c0_67] : memref<16x1024xbf16, #tpu.memory_space<vmem>>, vector<16x1024xbf16>
    %113 = arith.truncf %111 : vector<2x16xf32> to vector<2x16xbf16>
    %cst_68 = arith.constant dense<0.000000e+00> : vector<2x1024xf32>
    %114 = tpu.matmul %113, %112, %cst_68 {dimension_numbers = #tpu.dot_dimension_numbers<[1], [0], [0], [1], [0, 0, 1, 1], [], []>} : vector<2x16xbf16>, vector<16x1024xbf16>, vector<2x1024xf32> -> vector<2x1024xf32>
    %c0_69 = arith.constant 0 : index
    %c0_70 = arith.constant 0 : index
    %c0_71 = arith.constant 0 : index
    %115 = vector.load %arg9[%c0_69, %c0_70, %c0_71] : memref<1x2x1024xf32, #tpu.memory_space<vmem>>, vector<1x2x1024xf32>
    %116 = vector.shape_cast %115 : vector<1x2x1024xf32> to vector<2x1024xf32>
    %117 = vector.shape_cast %114 : vector<2x1024xf32> to vector<1x2x1024xf32>
    tpu.vector_store %arg9[%c0_69, %c0_70, %c0_71], %117 {strides = array<i32>} : memref<1x2x1024xf32, #tpu.memory_space<vmem>>, vector<1x2x1024xf32>,
    return
  }
  func.func @transform_0(%arg0: i32) -> (i32, i32, i32) {
    %c0_i32 = arith.constant 0 : i32
    %c0_i32_0 = arith.constant 0 : i32
    %c0_i32_1 = arith.constant 0 : i32
    return %arg0, %c0_i32, %c0_i32_0 : i32, i32, i32
  }
  func.func @transform_1(%arg0: i32) -> (i32, i32, i32) {
    %c0_i32 = arith.constant 0 : i32
    %c0_i32_0 = arith.constant 0 : i32
    %c0_i32_1 = arith.constant 0 : i32
    return %arg0, %c0_i32, %c0_i32_0 : i32, i32, i32
  }
  func.func @transform_2(%arg0: i32) -> (i32, i32) {
    %c0_i32 = arith.constant 0 : i32
    %c0_i32_0 = arith.constant 0 : i32
    %c0_i32_1 = arith.constant 0 : i32
    return %c0_i32, %c0_i32_0 : i32, i32
  }
  func.func @transform_3(%arg0: i32) -> (i32, i32) {
    %c0_i32 = arith.constant 0 : i32
    %c0_i32_0 = arith.constant 0 : i32
    %c0_i32_1 = arith.constant 0 : i32
    return %c0_i32, %c0_i32_0 : i32, i32
  }
  func.func @transform_4(%arg0: i32) -> (i32, i32) {
    %c0_i32 = arith.constant 0 : i32
    %c0_i32_0 = arith.constant 0 : i32
    %c0_i32_1 = arith.constant 0 : i32
    return %c0_i32, %c0_i32_0 : i32, i32
  }
  func.func @transform_5(%arg0: i32) -> (i32, i32) {
    %c0_i32 = arith.constant 0 : i32
    %c0_i32_0 = arith.constant 0 : i32
    %c0_i32_1 = arith.constant 0 : i32
    return %c0_i32, %c0_i32_0 : i32, i32
  }
  func.func @transform_6(%arg0: i32) -> (i32, i32) {
    %c0_i32 = arith.constant 0 : i32
    %c0_i32_0 = arith.constant 0 : i32
    %c0_i32_1 = arith.constant 0 : i32
    return %c0_i32, %c0_i32_0 : i32, i32
  }
  func.func @transform_7(%arg0: i32) -> (i32, i32) {
    %c0_i32 = arith.constant 0 : i32
    %c0_i32_0 = arith.constant 0 : i32
    %c0_i32_1 = arith.constant 0 : i32
    return %c0_i32, %c0_i32_0 : i32, i32
  }
  func.func @transform_8(%arg0: i32) -> (i32, i32, i32) {
    %c0_i32 = arith.constant 0 : i32
    %c0_i32_0 = arith.constant 0 : i32
    %c0_i32_1 = arith.constant 0 : i32
    return %arg0, %c0_i32, %c0_i32_0 : i32, i32, i32
  }
  func.func @transform_9(%arg0: i32) -> (i32, i32, i32) {
    %c0_i32 = arith.constant 0 : i32
    %c0_i32_0 = arith.constant 0 : i32
    %c0_i32_1 = arith.constant 0 : i32
    return %arg0, %c0_i32, %c0_i32_0 : i32, i32, i32
  }
}

</mosaic_0001>

<llo_original>
// kernel: core.1
$region0: #{core.1}
  #allocation0 [shape = 'u32[]', space=smem, size = 0x4, offset = 0x4, fixed_abs, tag = 'smem constant byte address 0x4 - core index']
  #allocation1 [shape = 'u32[144,128]{1,0:T(1,128)}', space=vmem, size = 0x12000, scoped, tag = 'internal scratch']
  %s0 = inlined_call_operand.vmem [shape: bf16[2,16,192], index: 0, kind: input, shape index: {}]
  %s1 = inlined_call_operand.vmem [shape: f32[2,8,32], index: 1, kind: input, shape index: {}]
  %s2 = inlined_call_operand.vmem [shape: bf16[192,32], index: 2, kind: input, shape index: {}]
  %s3 = inlined_call_operand.vmem [shape: bf16[32,1152], index: 3, kind: input, shape index: {}]
  %s4 = inlined_call_operand.vmem [shape: bf16[64,256], index: 4, kind: input, shape index: {}]
  %s5 = inlined_call_operand.vmem [shape: f32[1,1408], index: 5, kind: input, shape index: {}]
  %s6 = inlined_call_operand.vmem [shape: f32[16,72], index: 6, kind: input, shape index: {}]
  %s7 = inlined_call_operand.vmem [shape: bf16[16,1024], index: 7, kind: input, shape index: {}]
  %s8 = inlined_call_operand.vmem [shape: f32[2,2,1024], index: 8, kind: output, shape index: {0}]
  %s9 = inlined_call_operand.vmem [shape: f32[2,2,1], index: 9, kind: output, shape index: {1}]
  %10 = xla_tuple %s8, %s9
  %s11 = sld [smem:[#allocation0]]
  $region73: #{core.1} parent=0
    _
  %s13 = ssub.s32 1, %s11
  %s14 = scalar_select 0, %s13, %s11
  loop: start=0, step=1, limit=4
  $region2: #{core.1} parent=0 // loop_pre_header
    _
  $region3: #{core.1} parent=0 // loop_header
    %s16 = sphi 0, %s20
    %p17 = scmp.ge.s32.totalorder %s16, 4
    %s26 = sphi 0, %s28
    %s29 = sphi 0, %s26
    %s30 = sphi 0, %s29
    %s46 = sphi 0, %s30
    %s52 = sphi 0, %s54
    %s55 = sphi 0, %s52
    %s56 = sphi 0, %s55
    %s72 = sphi 0, %s56
    %s76 = sphi 0, %s76
    %s78 = sphi 0, %s76
    %s79 = sphi 0, %s78
    %s93 = sphi 0, %s79
    %s97 = sphi 0, %s97
    %s99 = sphi 0, %s97
    %s100 = sphi 0, %s99
    %s114 = sphi 0, %s100
    %s118 = sphi 0, %s118
    %s120 = sphi 0, %s118
    %s121 = sphi 0, %s120
    %s135 = sphi 0, %s121
    %s139 = sphi 0, %s139
    %s141 = sphi 0, %s139
    %s142 = sphi 0, %s141
    %s156 = sphi 0, %s142
    %s160 = sphi 0, %s160
    %s162 = sphi 0, %s160
    %s163 = sphi 0, %s162
    %s177 = sphi 0, %s163
    %s181 = sphi 0, %s181
    %s183 = sphi 0, %s181
    %s184 = sphi 0, %s183
    %s198 = sphi 0, %s184
    %s204 = sphi 0, %s206
    %s207 = sphi 0, %s204
    %s208 = sphi 0, %s207
    %s224 = sphi 0, %s208
    %s230 = sphi 0, %s232
    %s233 = sphi 0, %s230
    %s234 = sphi 0, %s233
    %s250 = sphi 0, %s234
  $region4: #{core.1} parent=0 // loop_header_branch
    %19 = sbr.rel (%p17) target = $region8
  $region5: #{core.1} parent=0 // loop_body
    %s21 = ssub.s32 %s16, 1
    %s22 = ssub.s32 %s16, 2
    %s23 = sadd.s32 %s16, 1
    %s24 = ssub.s32 %s16, %s23
    %p25 = scmp.eq.s32.totalorder %s24, 0
    %s27 = sadd.s32 %s26, 1
    %s28 = scalar_select %p25, %s26, %s27
    %p31 = pneg %p25
    %p32 = scmp.eq.s32.totalorder %s16, 1
    %p33 = por %p31, %p32
    %p34 = scmp.ne.s32.totalorder %s26, %s29
    %p35 = scmp.eq.s32.totalorder %s16, 0
    %p36 = por %p34, %p35
    %p37 = scmp.ne.s32.totalorder %s26, %s29
    %p38 = scmp.eq.s32.totalorder %s21, 1
    %p39 = por %p37, %p38
    %p40 = scmp.ne.s32.totalorder %s29, %s30
    %p41 = scmp.eq.s32.totalorder %s21, 0
    %p42 = por %p40, %p41
    %p43 = scmp.ne.s32.totalorder %s29, %s30
    %p44 = scmp.eq.s32.totalorder %s22, 1
    %p45 = por %p43, %p44
    %p47 = scmp.ne.s32.totalorder %s30, %s46
    %p48 = scmp.eq.s32.totalorder %s22, 0
    %p49 = por %p47, %p48
    %s50 = ssub.s32 %s16, %s23
    %p51 = scmp.eq.s32.totalorder %s50, 0
    %s53 = sadd.s32 %s52, 1
    %s54 = scalar_select %p51, %s52, %s53
    %p57 = pneg %p51
    %p58 = scmp.eq.s32.totalorder %s16, 1
    %p59 = por %p57, %p58
    %p60 = scmp.ne.s32.totalorder %s52, %s55
    %p61 = scmp.eq.s32.totalorder %s16, 0
    %p62 = por %p60, %p61
    %p63 = scmp.ne.s32.totalorder %s52, %s55
    %p64 = scmp.eq.s32.totalorder %s21, 1
    %p65 = por %p63, %p64
    %p66 = scmp.ne.s32.totalorder %s55, %s56
    %p67 = scmp.eq.s32.totalorder %s21, 0
    %p68 = por %p66, %p67
    %p69 = scmp.ne.s32.totalorder %s55, %s56
    %p70 = scmp.eq.s32.totalorder %s22, 1
    %p71 = por %p69, %p70
    %p73 = scmp.ne.s32.totalorder %s56, %s72
    %p74 = scmp.eq.s32.totalorder %s22, 0
    %p75 = por %p73, %p74
    %s77 = sadd.s32 %s76, 1
    %p80 = scmp.eq.s32.totalorder %s16, 1
    %p81 = scmp.ne.s32.totalorder %s76, %s78
    %p82 = scmp.eq.s32.totalorder %s16, 0
    %p83 = por %p81, %p82
    %p84 = scmp.ne.s32.totalorder %s76, %s78
    %p85 = scmp.eq.s32.totalorder %s21, 1
    %p86 = por %p84, %p85
    %p87 = scmp.ne.s32.totalorder %s78, %s79
    %p88 = scmp.eq.s32.totalorder %s21, 0
    %p89 = por %p87, %p88
    %p90 = scmp.ne.s32.totalorder %s78, %s79
    %p91 = scmp.eq.s32.totalorder %s22, 1
    %p92 = por %p90, %p91
    %p94 = scmp.ne.s32.totalorder %s79, %s93
    %p95 = scmp.eq.s32.totalorder %s22, 0
    %p96 = por %p94, %p95
    %s98 = sadd.s32 %s97, 1
    %p101 = scmp.eq.s32.totalorder %s16, 1
    %p102 = scmp.ne.s32.totalorder %s97, %s99
    %p103 = scmp.eq.s32.totalorder %s16, 0
    %p104 = por %p102, %p103
    %p105 = scmp.ne.s32.totalorder %s97, %s99
    %p106 = scmp.eq.s32.totalorder %s21, 1
    %p107 = por %p105, %p106
    %p108 = scmp.ne.s32.totalorder %s99, %s100
    %p109 = scmp.eq.s32.totalorder %s21, 0
    %p110 = por %p108, %p109
    %p111 = scmp.ne.s32.totalorder %s99, %s100
    %p112 = scmp.eq.s32.totalorder %s22, 1
    %p113 = por %p111, %p112
    %p115 = scmp.ne.s32.totalorder %s100, %s114
    %p116 = scmp.eq.s32.totalorder %s22, 0
    %p117 = por %p115, %p116
    %s119 = sadd.s32 %s118, 1
    %p122 = scmp.eq.s32.totalorder %s16, 1
    %p123 = scmp.ne.s32.totalorder %s118, %s120
    %p124 = scmp.eq.s32.totalorder %s16, 0
    %p125 = por %p123, %p124
    %p126 = scmp.ne.s32.totalorder %s118, %s120
    %p127 = scmp.eq.s32.totalorder %s21, 1
    %p128 = por %p126, %p127
    %p129 = scmp.ne.s32.totalorder %s120, %s121
    %p130 = scmp.eq.s32.totalorder %s21, 0
    %p131 = por %p129, %p130
    %p132 = scmp.ne.s32.totalorder %s120, %s121
    %p133 = scmp.eq.s32.totalorder %s22, 1
    %p134 = por %p132, %p133
    %p136 = scmp.ne.s32.totalorder %s121, %s135
    %p137 = scmp.eq.s32.totalorder %s22, 0
    %p138 = por %p136, %p137
    %s140 = sadd.s32 %s139, 1
    %p143 = scmp.eq.s32.totalorder %s16, 1
    %p144 = scmp.ne.s32.totalorder %s139, %s141
    %p145 = scmp.eq.s32.totalorder %s16, 0
    %p146 = por %p144, %p145
    %p147 = scmp.ne.s32.totalorder %s139, %s141
    %p148 = scmp.eq.s32.totalorder %s21, 1
    %p149 = por %p147, %p148
    %p150 = scmp.ne.s32.totalorder %s141, %s142
    %p151 = scmp.eq.s32.totalorder %s21, 0
    %p152 = por %p150, %p151
    %p153 = scmp.ne.s32.totalorder %s141, %s142
    %p154 = scmp.eq.s32.totalorder %s22, 1
    %p155 = por %p153, %p154
    %p157 = scmp.ne.s32.totalorder %s142, %s156
    %p158 = scmp.eq.s32.totalorder %s22, 0
    %p159 = por %p157, %p158
    %s161 = sadd.s32 %s160, 1
    %p164 = scmp.eq.s32.totalorder %s16, 1
    %p165 = scmp.ne.s32.totalorder %s160, %s162
    %p166 = scmp.eq.s32.totalorder %s16, 0
    %p167 = por %p165, %p166
    %p168 = scmp.ne.s32.totalorder %s160, %s162
    %p169 = scmp.eq.s32.totalorder %s21, 1
    %p170 = por %p168, %p169
    %p171 = scmp.ne.s32.totalorder %s162, %s163
    %p172 = scmp.eq.s32.totalorder %s21, 0
    %p173 = por %p171, %p172
    %p174 = scmp.ne.s32.totalorder %s162, %s163
    %p175 = scmp.eq.s32.totalorder %s22, 1
    %p176 = por %p174, %p175
    %p178 = scmp.ne.s32.totalorder %s163, %s177
    %p179 = scmp.eq.s32.totalorder %s22, 0
    %p180 = por %p178, %p179
    %s182 = sadd.s32 %s181, 1
    %p185 = scmp.eq.s32.totalorder %s16, 1
    %p186 = scmp.ne.s32.totalorder %s181, %s183
    %p187 = scmp.eq.s32.totalorder %s16, 0
    %p188 = por %p186, %p187
    %p189 = scmp.ne.s32.totalorder %s181, %s183
    %p190 = scmp.eq.s32.totalorder %s21, 1
    %p191 = por %p189, %p190
    %p192 = scmp.ne.s32.totalorder %s183, %s184
    %p193 = scmp.eq.s32.totalorder %s21, 0
    %p194 = por %p192, %p193
    %p195 = scmp.ne.s32.totalorder %s183, %s184
    %p196 = scmp.eq.s32.totalorder %s22, 1
    %p197 = por %p195, %p196
    %p199 = scmp.ne.s32.totalorder %s184, %s198
    %p200 = scmp.eq.s32.totalorder %s22, 0
    %p201 = por %p199, %p200
    %s202 = ssub.s32 %s16, %s23
    %p203 = scmp.eq.s32.totalorder %s202, 0
    %s205 = sadd.s32 %s204, 1
    %s206 = scalar_select %p203, %s204, %s205
    %p209 = pneg %p203
    %p210 = scmp.eq.s32.totalorder %s16, 1
    %p211 = por %p209, %p210
    %p212 = scmp.ne.s32.totalorder %s204, %s207
    %p213 = scmp.eq.s32.totalorder %s16, 0
    %p214 = por %p212, %p213
    %p215 = scmp.ne.s32.totalorder %s204, %s207
    %p216 = scmp.eq.s32.totalorder %s21, 1
    %p217 = por %p215, %p216
    %p218 = scmp.ne.s32.totalorder %s207, %s208
    %p219 = scmp.eq.s32.totalorder %s21, 0
    %p220 = por %p218, %p219
    %p221 = scmp.ne.s32.totalorder %s207, %s208
    %p222 = scmp.eq.s32.totalorder %s22, 1
    %p223 = por %p221, %p222
    %p225 = scmp.ne.s32.totalorder %s208, %s224
    %p226 = scmp.eq.s32.totalorder %s22, 0
    %p227 = por %p225, %p226
    %s228 = ssub.s32 %s16, %s23
    %p229 = scmp.eq.s32.totalorder %s228, 0
    %s231 = sadd.s32 %s230, 1
    %s232 = scalar_select %p229, %s230, %s231
    %p235 = pneg %p229
    %p236 = scmp.eq.s32.totalorder %s16, 1
    %p237 = por %p235, %p236
    %p238 = scmp.ne.s32.totalorder %s230, %s233
    %p239 = scmp.eq.s32.totalorder %s16, 0
    %p240 = por %p238, %p239
    %p241 = scmp.ne.s32.totalorder %s230, %s233
    %p242 = scmp.eq.s32.totalorder %s21, 1
    %p243 = por %p241, %p242
    %p244 = scmp.ne.s32.totalorder %s233, %s234
    %p245 = scmp.eq.s32.totalorder %s21, 0
    %p246 = por %p244, %p245
    %p247 = scmp.ne.s32.totalorder %s233, %s234
    %p248 = scmp.eq.s32.totalorder %s22, 1
    %p249 = por %p247, %p248
    %p251 = scmp.ne.s32.totalorder %s234, %s250
    %p252 = scmp.eq.s32.totalorder %s22, 0
    %p253 = por %p251, %p252
    %p254 = scmp.le.s32.totalorder 1, %s16
    %p255 = scmp.lt.s32.totalorder %s16, 3
    %p256 = pnand %p254, %p255
    %p257 = pneg %p256
    // Predicated region
    $region9: #{core.1} parent=5 // pred_check
      _
    $region10: #{core.1} parent=5 // pred_check_branch
      %259 = sbr.rel (%p256) target = $region12
    $region11: #{core.1} parent=5 // pred_region
      %s260 = ssub.s32 %s16, 1
      // Predicated region
      $region13: #{core.1} parent=11 // pred_check
        %p261 = pneg %p89
      $region14: #{core.1} parent=11 // pred_check_branch
        %263 = sbr.rel (%p261) target = $region16
      $region15: #{core.1} parent=11 // pred_region
        _
      $region16: #{core.1} parent=11 // pred_fallthru
        _
      // Predicated region
      $region17: #{core.1} parent=11 // pred_check
        %p264 = pneg %p110
      $region18: #{core.1} parent=11 // pred_check_branch
        %266 = sbr.rel (%p264) target = $region20
      $region19: #{core.1} parent=11 // pred_region
        _
      $region20: #{core.1} parent=11 // pred_fallthru
        _
      // Predicated region
      $region21: #{core.1} parent=11 // pred_check
        %p267 = pneg %p131
      $region22: #{core.1} parent=11 // pred_check_branch
        %269 = sbr.rel (%p267) target = $region24
      $region23: #{core.1} parent=11 // pred_region
        _
      $region24: #{core.1} parent=11 // pred_fallthru
        _
      // Predicated region
      $region25: #{core.1} parent=11 // pred_check
        %p270 = pneg %p152
      $region26: #{core.1} parent=11 // pred_check_branch
        %272 = sbr.rel (%p270) target = $region28
      $region27: #{core.1} parent=11 // pred_region
        _
      $region28: #{core.1} parent=11 // pred_fallthru
        _
      // Predicated region
      $region29: #{core.1} parent=11 // pred_check
        %p273 = pneg %p173
      $region30: #{core.1} parent=11 // pred_check_branch
        %275 = sbr.rel (%p273) target = $region32
      $region31: #{core.1} parent=11 // pred_region
        _
      $region32: #{core.1} parent=11 // pred_fallthru
        _
      // Predicated region
      $region33: #{core.1} parent=11 // pred_check
        %p276 = pneg %p194
      $region34: #{core.1} parent=11 // pred_check_branch
        %278 = sbr.rel (%p276) target = $region36
      $region35: #{core.1} parent=11 // pred_region
        _
      $region36: #{core.1} parent=11 // pred_fallthru
        _
    $region12: #{core.1} parent=5 // pred_fallthru
      _
    %p279 = scmp.lt.s32.totalorder %s16, 2
    // Predicated region
    $region37: #{core.1} parent=5 // pred_check
      %p280 = pneg %p279
    $region38: #{core.1} parent=5 // pred_check_branch
      %282 = sbr.rel (%p280) target = $region40
    $region39: #{core.1} parent=5 // pred_region
      // Predicated region
      $region41: #{core.1} parent=39 // pred_check
        %p283 = pneg %p36
      $region42: #{core.1} parent=39 // pred_check_branch
        %285 = sbr.rel (%p283) target = $region44
      $region43: #{core.1} parent=39 // pred_region
        %p286 = scmp.lt.s32.totalorder %s16, 1
        %s287 = scalar_select %p286, %s16, 1
        %s288 = smul.addr %s287, 4
        %s289 = smul.addr %s288, 4
        %s290 = scalar_lea.vmem %s0, %s289
      $region44: #{core.1} parent=39 // pred_fallthru
        _
      // Predicated region
      $region45: #{core.1} parent=39 // pred_check
        %p291 = pneg %p62
      $region46: #{core.1} parent=39 // pred_check_branch
        %293 = sbr.rel (%p291) target = $region48
      $region47: #{core.1} parent=39 // pred_region
        %p294 = scmp.lt.s32.totalorder %s16, 1
        %s295 = scalar_select %p294, %s16, 1
        %s296 = smul.addr %s295, 8
        %s297 = scalar_lea.vmem %s1, %s296
      $region48: #{core.1} parent=39 // pred_fallthru
        _
    $region40: #{core.1} parent=5 // pred_fallthru
      _
    %p298 = scmp.le.s32.totalorder 1, %s16
    %p299 = scmp.lt.s32.totalorder %s16, 3
    %p300 = pnand %p298, %p299
    %p301 = pneg %p300
    // Predicated region
    $region49: #{core.1} parent=5 // pred_check
      _
    $region50: #{core.1} parent=5 // pred_check_branch
      %303 = sbr.rel (%p300) target = $region52
    $region51: #{core.1} parent=5 // pred_region
      %s304 = ssub.s32 %s16, 1
      %p305 = scmp.lt.s32.totalorder %s21, 1
      %s306 = scalar_select %p305, %s21, 1
      %s307 = smul.addr %s306, 4
      %s308 = smul.addr %s307, 4
      %s309 = scalar_lea.vmem %s0, %s308
      %p310 = pneg %p42
      %p311 = pneg %p39
      %p312 = scmp.lt.s32.totalorder %s21, 1
      %s313 = scalar_select %p312, %s21, 1
      %s314 = smul.addr %s313, 8
      %s315 = scalar_lea.vmem %s1, %s314
      %p316 = pneg %p68
      %p317 = pneg %p65
      %p318 = pneg %p89
      %p319 = pneg %p86
      %p320 = pneg %p110
      %p321 = pneg %p107
      %p322 = pneg %p131
      %p323 = pneg %p128
      %p324 = pneg %p152
      %p325 = pneg %p149
      %p326 = pneg %p173
      %p327 = pneg %p170
      %p328 = pneg %p194
      %p329 = pneg %p191
      %p330 = pneg %p220
      %p331 = pneg %p217
      %p332 = scmp.lt.s32.totalorder %s21, 1
      %s333 = scalar_select %p332, %s21, 1
      %s334 = smul.addr %s333, 8
      %s335 = smul.addr %s334, 2
      %s336 = scalar_lea.vmem %s8, %s335
      %p337 = pneg %p246
      %p338 = pneg %p243
      %p339 = scmp.lt.s32.totalorder %s21, 1
      %s340 = scalar_select %p339, %s21, 1
      %s341 = smul.addr %s340, 2
      %s342 = scalar_lea.vmem %s9, %s341
      %p343 = scmp.lt.s32.totalorder %s21, 1
      %s344 = scalar_select %p343, %s21, 1
      %s345 = smul.addr %s344, 4
      %s346 = smul.addr %s345, 4
      %s347 = scalar_lea.vmem %s0, %s346
      %p348 = scmp.lt.s32.totalorder %s21, 1
      %s349 = scalar_select %p348, %s21, 1
      %s350 = smul.addr %s349, 8
      %s351 = scalar_lea.vmem %s1, %s350
      %p352 = scmp.lt.s32.totalorder %s21, 1
      %s353 = scalar_select %p352, %s21, 1
      %s354 = smul.addr %s353, 8
      %s355 = smul.addr %s354, 2
      %s356 = scalar_lea.vmem %s8, %s355
      %p357 = scmp.lt.s32.totalorder %s21, 1
      %s358 = scalar_select %p357, %s21, 1
      %s359 = smul.addr %s358, 2
      %s360 = scalar_lea.vmem %s9, %s359
      %v362 = vld [vmem:[%s347] sm:$0xff]
      %v363 = vld [vmem:[%s347 + $0x8] sm:$0xff]
      %v364 = vld [vmem:[%s2] sm:$0xf]
      %v365 = vld [vmem:[%s2 + $0x4] sm:$0xf]
      %v366 = vld [vmem:[%s2 + $0x8] sm:$0xf]
      %v367 = vld [vmem:[%s2 + $0xc] sm:$0xf]
      %v368 = vld [vmem:[%s2 + $0x10] sm:$0xf]
      %v369 = vld [vmem:[%s2 + $0x14] sm:$0xf]
      %v370 = vld [vmem:[%s2 + $0x18] sm:$0xf]
      %v371 = vld [vmem:[%s2 + $0x1c] sm:$0xf]
      %v372 = vld [vmem:[%s2 + $0x20] sm:$0xf]
      %v373 = vld [vmem:[%s2 + $0x24] sm:$0xf]
      %v374 = vld [vmem:[%s2 + $0x28] sm:$0xf]
      %v375 = vld [vmem:[%s2 + $0x2c] sm:$0xf]
      %v376 = vld [vmem:[%s2 + $0x30] sm:$0xf]
      %v377 = vld [vmem:[%s2 + $0x34] sm:$0xf]
      %v378 = vld [vmem:[%s2 + $0x38] sm:$0xf]
      %v379 = vld [vmem:[%s2 + $0x3c] sm:$0xf]
      %v380 = vld [vmem:[%s2 + $0x40] sm:$0xf]
      %v381 = vld [vmem:[%s2 + $0x44] sm:$0xf]
      %v382 = vld [vmem:[%s2 + $0x48] sm:$0xf]
      %v383 = vld [vmem:[%s2 + $0x4c] sm:$0xf]
      %v384 = vld [vmem:[%s2 + $0x50] sm:$0xf]
      %v385 = vld [vmem:[%s2 + $0x54] sm:$0xf]
      %v386 = vld [vmem:[%s2 + $0x58] sm:$0xf]
      %v387 = vld [vmem:[%s2 + $0x5c] sm:$0xf]
      %v388 = vld [vmem:[%s5] sm:$0x1]
      %v390 = vlaneseq
      %v391 = vshrl.u32 %v390, 7
      %v392 = vsub.s32 0, %v391
      %v393 = vrot.slane %v388, %v392
      %v397 = vunpack.c.l.b16 %v362
      %v398 = vunpack.c.h.b16 %v362
      %v399 = vunpack.c.l.b16 %v363
      %v400 = vunpack.c.h.b16 %v363
      %v401 = vpack.c.b16 %v399, %v397
      %v402 = vpack.c.b16 %v400, %v398
      %v428 = vunpack.c.l.b16 %v364
      %v429 = vunpack.c.l.b16 %v365
      %v430 = vunpack.c.l.b16 %v366
      %v431 = vunpack.c.l.b16 %v367
      %v432 = vunpack.c.l.b16 %v368
      %v433 = vunpack.c.l.b16 %v369
      %v434 = vunpack.c.l.b16 %v370
      %v435 = vunpack.c.l.b16 %v371
      %v436 = vunpack.c.l.b16 %v372
      %v437 = vunpack.c.l.b16 %v373
      %v438 = vunpack.c.l.b16 %v374
      %v439 = vunpack.c.l.b16 %v375
      %v440 = vunpack.c.l.b16 %v376
      %v441 = vunpack.c.l.b16 %v377
      %v442 = vunpack.c.l.b16 %v378
      %v443 = vunpack.c.l.b16 %v379
      %v444 = vunpack.c.l.b16 %v380
      %v445 = vunpack.c.l.b16 %v381
      %v446 = vunpack.c.l.b16 %v382
      %v447 = vunpack.c.l.b16 %v383
      %v448 = vunpack.c.l.b16 %v384
      %v449 = vunpack.c.l.b16 %v385
      %v450 = vunpack.c.l.b16 %v386
      %v451 = vunpack.c.l.b16 %v387
      %v452 = vpack.c.b16 %v429, %v428
      %v453 = vpack.c.b16 %v431, %v430
      %v454 = vpack.c.b16 %v433, %v432
      %v455 = vpack.c.b16 %v435, %v434
      %v456 = vpack.c.b16 %v437, %v436
      %v457 = vpack.c.b16 %v439, %v438
      %v458 = vpack.c.b16 %v441, %v440
      %v459 = vpack.c.b16 %v443, %v442
      %v460 = vpack.c.b16 %v445, %v444
      %v461 = vpack.c.b16 %v447, %v446
      %v462 = vpack.c.b16 %v449, %v448
      %v463 = vpack.c.b16 %v451, %v450
      %vm476 = vcmask 523264
      %v478 = vsel %vm476, %v402, 0
      %480 = vmatprep.subr.bf16.mxu0 0
      %481 = vmatpush1.bf16.msra.mxu0 %v452
      %482 = vmatprep.subr.bf16.mxu0 0
      %483 = vmatpush1.bf16.msra.mxu0 %v453
      %484 = vmatprep.subr.bf16.mxu0 0
      %485 = vmatpush1.bf16.msra.mxu0 %v454
      %486 = vmatprep.subr.bf16.mxu0 0
      %487 = vmatpush1.bf16.msra.mxu0 %v455
      %488 = vmatprep.subr.bf16.mxu0 0
      %489 = vmatpush1.bf16.msra.mxu0 %v456
      %490 = vmatprep.subr.bf16.mxu0 0
      %491 = vmatpush1.bf16.msra.mxu0 %v457
      %492 = vmatprep.subr.bf16.mxu0 0
      %493 = vmatpush1.bf16.msra.mxu0 %v458
      %494 = vmatprep.subr.bf16.mxu0 0
      %495 = vmatpush1.bf16.msra.mxu0 %v459
      %496 = vmatprep.subr.bf16.mxu0 0
      %497 = vmatpush1.bf16.msra.mxu0 %v460
      %498 = vmatprep.subr.bf16.mxu0 0
      %499 = vmatpush1.bf16.msra.mxu0 %v461
      %500 = vmatprep.subr.bf16.mxu0 0
      %501 = vmatpush1.bf16.msra.mxu0 %v462
      %502 = vmatprep.subr.bf16.mxu0 0
      %503 = vmatpush1.bf16.msra.mxu0 %v463
      %504 = vmatprep.subr.bf16.mxu0 0
      %505 = vmatpush1.bf16.msra.mxu0 0
      %506 = vmatprep.subr.bf16.mxu0 0
      %507 = vmatpush1.bf16.msra.mxu0 0
      %508 = vmatprep.subr.bf16.mxu0 0
      %509 = vmatpush1.bf16.msra.mxu0 0
      %510 = vmatprep.subr.bf16.mxu0 0
      %511 = vmatpush1.bf16.msra.mxu0 0
      %512 = vmatprep.mubr.bf16.mxu0 %v478
      %513 = vmatmul.mubr.bf16.gmra.mrb[0].mxu0 %v401
      %v514 = vpop.f32.mrb[0].mxu0
      %v515 = vadd.f32 %v393, %v514
      %v516 = vpop.f32.mrb[0].mxu0
      %v517 = vpop.f32.mrb[0].mxu0
      %v518 = vadd.f32 %v393, %v517
      %v519 = vpop.f32.mrb[0].mxu0
      %520 = vdwg.mxu0
      %v521 = vld [vmem:[%s3] sm:$0xf]
      %v522 = vld [vmem:[%s3 + $0x24] sm:$0xf]
      %v523 = vld [vmem:[%s3 + $0x48] sm:$0xf]
      %v524 = vld [vmem:[%s3 + $0x6c] sm:$0xf]
      %v525 = vpack.c.bf16 %v518, %v515
      %v526 = vld [vmem:[%s5 + $0x1] sm:$0x1]
      %v528 = vlaneseq
      %v529 = vshrl.u32 %v528, 7
      %v530 = vsub.s32 0, %v529
      %v531 = vrot.slane %v526, %v530
      %v537 = vunpack.c.l.b16 %v521
      %v538 = vunpack.c.l.b16 %v522
      %v539 = vunpack.c.l.b16 %v523
      %v540 = vunpack.c.l.b16 %v524
      %v541 = vpack.c.b16 %v538, %v537
      %v542 = vpack.c.b16 %v540, %v539
      %vm545 = vcmask 261120
      %v547 = vsel %vm545, %v525, 0
      %549 = vmatprep.subr.bf16.mxu0 0
      %550 = vmatpush1.bf16.msra.mxu0 %v541
      %551 = vmatprep.subr.bf16.mxu0 0
      %552 = vmatpush1.bf16.msra.mxu0 %v542
      %553 = vmatprep.subr.bf16.mxu0 0
      %554 = vmatpush1.bf16.msra.mxu0 0
      %555 = vmatprep.subr.bf16.mxu0 0
      %556 = vmatpush1.bf16.msra.mxu0 0
      %557 = vmatprep.subr.bf16.mxu0 0
      %558 = vmatpush1.bf16.msra.mxu0 0
      %559 = vmatprep.subr.bf16.mxu0 0
      %560 = vmatpush1.bf16.msra.mxu0 0
      %561 = vmatprep.subr.bf16.mxu0 0
      %562 = vmatpush1.bf16.msra.mxu0 0
      %563 = vmatprep.subr.bf16.mxu0 0
      %564 = vmatpush1.bf16.msra.mxu0 0
      %565 = vmatprep.subr.bf16.mxu0 0
      %566 = vmatpush1.bf16.msra.mxu0 0
      %567 = vmatprep.subr.bf16.mxu0 0
      %568 = vmatpush1.bf16.msra.mxu0 0
      %569 = vmatprep.subr.bf16.mxu0 0
      %570 = vmatpush1.bf16.msra.mxu0 0
      %571 = vmatprep.subr.bf16.mxu0 0
      %572 = vmatpush1.bf16.msra.mxu0 0
      %573 = vmatprep.subr.bf16.mxu0 0
      %574 = vmatpush1.bf16.msra.mxu0 0
      %575 = vmatprep.subr.bf16.mxu0 0
      %576 = vmatpush1.bf16.msra.mxu0 0
      %577 = vmatprep.subr.bf16.mxu0 0
      %578 = vmatpush1.bf16.msra.mxu0 0
      %579 = vmatprep.subr.bf16.mxu0 0
      %580 = vmatpush1.bf16.msra.mxu0 0
      %581 = vmatprep.mubr.bf16.mxu0 0
      %582 = vmatmul.mubr.bf16.gmra.mrb[0].mxu0 %v547
      %v583 = vpop.f32.mrb[0].mxu0
      %v584 = vadd.f32 %v531, %v583
      %v585 = vpop.f32.mrb[0].mxu0
      %v586 = vpop.f32.mrb[0].mxu0
      %v587 = vadd.f32 %v531, %v586
      %v588 = vpop.f32.mrb[0].mxu0
      %589 = vdwg.mxu0
      %v590 = vmax.f32 %v584, 0.0
      %v591 = vmax.f32 %v587, 0.0
      %v592 = vld [vmem:[%s4] sm:$0xf]
      %v593 = vld [vmem:[%s4 + $0x8] sm:$0xf]
      %v594 = vld [vmem:[%s4 + $0x10] sm:$0xf]
      %v595 = vld [vmem:[%s4 + $0x18] sm:$0xf]
      %v596 = vld [vmem:[%s4 + $0x20] sm:$0xf]
      %v597 = vld [vmem:[%s4 + $0x28] sm:$0xf]
      %v598 = vld [vmem:[%s4 + $0x30] sm:$0xf]
      %v599 = vld [vmem:[%s4 + $0x38] sm:$0xf]
      %v600 = vpack.c.bf16 %v591, %v590
      %v609 = vunpack.c.l.b16 %v592
      %v610 = vunpack.c.l.b16 %v593
      %v611 = vunpack.c.l.b16 %v594
      %v612 = vunpack.c.l.b16 %v595
      %v613 = vunpack.c.l.b16 %v596
      %v614 = vunpack.c.l.b16 %v597
      %v615 = vunpack.c.l.b16 %v598
      %v616 = vunpack.c.l.b16 %v599
      %v617 = vpack.c.b16 %v610, %v609
      %v618 = vpack.c.b16 %v612, %v611
      %v619 = vpack.c.b16 %v614, %v613
      %v620 = vpack.c.b16 %v616, %v615
      %v626 = vsel %vm476, %v600, 0
      %628 = vmatprep.subr.bf16.mxu0 0
      %629 = vmatpush1.bf16.msra.mxu0 %v617
      %630 = vmatprep.subr.bf16.mxu0 0
      %631 = vmatpush1.bf16.msra.mxu0 %v618
      %632 = vmatprep.subr.bf16.mxu0 0
      %633 = vmatpush1.bf16.msra.mxu0 %v619
      %634 = vmatprep.subr.bf16.mxu0 0
      %635 = vmatpush1.bf16.msra.mxu0 %v620
      %636 = vmatprep.subr.bf16.mxu0 0
      %637 = vmatpush1.bf16.msra.mxu0 0
      %638 = vmatprep.subr.bf16.mxu0 0
      %639 = vmatpush1.bf16.msra.mxu0 0
      %640 = vmatprep.subr.bf16.mxu0 0
      %641 = vmatpush1.bf16.msra.mxu0 0
      %642 = vmatprep.subr.bf16.mxu0 0
      %643 = vmatpush1.bf16.msra.mxu0 0
      %644 = vmatprep.subr.bf16.mxu0 0
      %645 = vmatpush1.bf16.msra.mxu0 0
      %646 = vmatprep.subr.bf16.mxu0 0
      %647 = vmatpush1.bf16.msra.mxu0 0
      %648 = vmatprep.subr.bf16.mxu0 0
      %649 = vmatpush1.bf16.msra.mxu0 0
      %650 = vmatprep.subr.bf16.mxu0 0
      %651 = vmatpush1.bf16.msra.mxu0 0
      %652 = vmatprep.subr.bf16.mxu0 0
      %653 = vmatpush1.bf16.msra.mxu0 0
      %654 = vmatprep.subr.bf16.mxu0 0
      %655 = vmatpush1.bf16.msra.mxu0 0
      %656 = vmatprep.subr.bf16.mxu0 0
      %657 = vmatpush1.bf16.msra.mxu0 0
      %658 = vmatprep.subr.bf16.mxu0 0
      %659 = vmatpush1.bf16.msra.mxu0 0
      %660 = vmatprep.mubr.bf16.mxu0 0
      %661 = vmatmul.mubr.bf16.gmra.mrb[0].mxu0 %v626
      %v662 = vpop.f32.mrb[0].mxu0
      %v663 = vadd.f32 0.0, %v662
      %v664 = vpop.f32.mrb[0].mxu0
      %v665 = vpop.f32.mrb[0].mxu0
      %v666 = vadd.f32 0.0, %v665
      %v667 = vpop.f32.mrb[0].mxu0
      %668 = vdwg.mxu0
      %v669 = vadd.f32 %v515, %v663
      %v670 = vadd.f32 %v518, %v666
      %v671 = vld [vmem:[%s5 + $0x2] sm:$0x1]
      %v673 = vlaneseq
      %v674 = vshrl.u32 %v673, 7
      %v675 = vsub.s32 0, %v674
      %v676 = vrot.slane %v671, %v675
      %v678 = vadd.f32 %v669, %v676
      %v679 = vadd.f32 %v670, %v676
      %v680 = vld [vmem:[%s3 + $0x4] sm:$0xf]
      %v681 = vld [vmem:[%s3 + $0x28] sm:$0xf]
      %v682 = vld [vmem:[%s3 + $0x4c] sm:$0xf]
      %v683 = vld [vmem:[%s3 + $0x70] sm:$0xf]
      %v684 = vpack.c.bf16 %v679, %v678
      %v685 = vld [vmem:[%s5 + $0x3] sm:$0x1]
      %v687 = vlaneseq
      %v688 = vshrl.u32 %v687, 7
      %v689 = vsub.s32 0, %v688
      %v690 = vrot.slane %v685, %v689
      %v696 = vunpack.c.l.b16 %v680
      %v697 = vunpack.c.l.b16 %v681
      %v698 = vunpack.c.l.b16 %v682
      %v699 = vunpack.c.l.b16 %v683
      %v700 = vpack.c.b16 %v697, %v696
      %v701 = vpack.c.b16 %v699, %v698
      %v705 = vsel %vm545, %v684, 0
      %707 = vmatprep.subr.bf16.mxu0 0
      %708 = vmatpush1.bf16.msra.mxu0 %v700
      %709 = vmatprep.subr.bf16.mxu0 0
      %710 = vmatpush1.bf16.msra.mxu0 %v701
      %711 = vmatprep.subr.bf16.mxu0 0
      %712 = vmatpush1.bf16.msra.mxu0 0
      %713 = vmatprep.subr.bf16.mxu0 0
      %714 = vmatpush1.bf16.msra.mxu0 0
      %715 = vmatprep.subr.bf16.mxu0 0
      %716 = vmatpush1.bf16.msra.mxu0 0
      %717 = vmatprep.subr.bf16.mxu0 0
      %718 = vmatpush1.bf16.msra.mxu0 0
      %719 = vmatprep.subr.bf16.mxu0 0
      %720 = vmatpush1.bf16.msra.mxu0 0
      %721 = vmatprep.subr.bf16.mxu0 0
      %722 = vmatpush1.bf16.msra.mxu0 0
      %723 = vmatprep.subr.bf16.mxu0 0
      %724 = vmatpush1.bf16.msra.mxu0 0
      %725 = vmatprep.subr.bf16.mxu0 0
      %726 = vmatpush1.bf16.msra.mxu0 0
      %727 = vmatprep.subr.bf16.mxu0 0
      %728 = vmatpush1.bf16.msra.mxu0 0
      %729 = vmatprep.subr.bf16.mxu0 0
      %730 = vmatpush1.bf16.msra.mxu0 0
      %731 = vmatprep.subr.bf16.mxu0 0
      %732 = vmatpush1.bf16.msra.mxu0 0
      %733 = vmatprep.subr.bf16.mxu0 0
      %734 = vmatpush1.bf16.msra.mxu0 0
      %735 = vmatprep.subr.bf16.mxu0 0
      %736 = vmatpush1.bf16.msra.mxu0 0
      %737 = vmatprep.subr.bf16.mxu0 0
      %738 = vmatpush1.bf16.msra.mxu0 0
      %739 = vmatprep.mubr.bf16.mxu0 0
      %740 = vmatmul.mubr.bf16.gmra.mrb[0].mxu0 %v705
      %v741 = vpop.f32.mrb[0].mxu0
      %v742 = vadd.f32 %v690, %v741
      %v743 = vpop.f32.mrb[0].mxu0
      %v744 = vpop.f32.mrb[0].mxu0
      %v745 = vadd.f32 %v690, %v744
      %v746 = vpop.f32.mrb[0].mxu0
      %747 = vdwg.mxu0
      %v748 = vld [vmem:[%s351] sm:$0xff]
      %v749 = vld [vmem:[%s3 + $0x8] sm:$0xf]
      %v750 = vld [vmem:[%s3 + $0x2c] sm:$0xf]
      %v751 = vld [vmem:[%s3 + $0x50] sm:$0xf]
      %v752 = vld [vmem:[%s3 + $0x74] sm:$0xf]
      %v753 = vpack.c.bf16 %v748, %v748
      %v754 = vld [vmem:[%s5 + $0x4] sm:$0x1]
      %v756 = vlaneseq
      %v757 = vshrl.u32 %v756, 7
      %v758 = vsub.s32 0, %v757
      %v759 = vrot.slane %v754, %v758
      %v765 = vunpack.c.l.b16 %v749
      %v766 = vunpack.c.l.b16 %v750
      %v767 = vunpack.c.l.b16 %v751
      %v768 = vunpack.c.l.b16 %v752
      %v769 = vpack.c.b16 %v766, %v765
      %v770 = vpack.c.b16 %v768, %v767
      %v774 = vsel %vm545, %v753, 0
      %776 = vmatprep.subr.bf16.mxu0 0
      %777 = vmatpush1.bf16.msra.mxu0 %v769
      %778 = vmatprep.subr.bf16.mxu0 0
      %779 = vmatpush1.bf16.msra.mxu0 %v770
      %780 = vmatprep.subr.bf16.mxu0 0
      %781 = vmatpush1.bf16.msra.mxu0 0
      %782 = vmatprep.subr.bf16.mxu0 0
      %783 = vmatpush1.bf16.msra.mxu0 0
      %784 = vmatprep.subr.bf16.mxu0 0
      %785 = vmatpush1.bf16.msra.mxu0 0
      %786 = vmatprep.subr.bf16.mxu0 0
      %787 = vmatpush1.bf16.msra.mxu0 0
      %788 = vmatprep.subr.bf16.mxu0 0
      %789 = vmatpush1.bf16.msra.mxu0 0
      %790 = vmatprep.subr.bf16.mxu0 0
      %791 = vmatpush1.bf16.msra.mxu0 0
      %792 = vmatprep.subr.bf16.mxu0 0
      %793 = vmatpush1.bf16.msra.mxu0 0
      %794 = vmatprep.subr.bf16.mxu0 0
      %795 = vmatpush1.bf16.msra.mxu0 0
      %796 = vmatprep.subr.bf16.mxu0 0
      %797 = vmatpush1.bf16.msra.mxu0 0
      %798 = vmatprep.subr.bf16.mxu0 0
      %799 = vmatpush1.bf16.msra.mxu0 0
      %800 = vmatprep.subr.bf16.mxu0 0
      %801 = vmatpush1.bf16.msra.mxu0 0
      %802 = vmatprep.subr.bf16.mxu0 0
      %803 = vmatpush1.bf16.msra.mxu0 0
      %804 = vmatprep.subr.bf16.mxu0 0
      %805 = vmatpush1.bf16.msra.mxu0 0
      %806 = vmatprep.subr.bf16.mxu0 0
      %807 = vmatpush1.bf16.msra.mxu0 0
      %808 = vmatprep.mubr.bf16.mxu0 0
      %809 = vmatmul.mubr.bf16.gmra.mrb[0].mxu0 %v774
      %v810 = vpop.f32.mrb[0].mxu0
      %v811 = vadd.f32 %v759, %v810
      %v812 = vpop.f32.mrb[0].mxu0
      %v813 = vpop.f32.mrb[0].mxu0
      %v814 = vpop.f32.mrb[0].mxu0
      %815 = vdwg.mxu0
      %v816 = vld [vmem:[%s3 + $0xc] sm:$0xf]
      %v817 = vld [vmem:[%s3 + $0x30] sm:$0xf]
      %v818 = vld [vmem:[%s3 + $0x54] sm:$0xf]
      %v819 = vld [vmem:[%s3 + $0x78] sm:$0xf]
      %v820 = vpack.c.bf16 %v745, %v742
      %v821 = vld [vmem:[%s6] sm:$0xff]
      %v822 = vld [vmem:[%s6 + $0x8] sm:$0xff]
      %v827 = vunpack.c.l.b16 %v816
      %v828 = vunpack.c.l.b16 %v817
      %v829 = vunpack.c.l.b16 %v818
      %v830 = vunpack.c.l.b16 %v819
      %v831 = vpack.c.b16 %v828, %v827
      %v832 = vpack.c.b16 %v830, %v829
      %v836 = vsel %vm545, %v820, 0
      %838 = vmatprep.subr.bf16.mxu0 0
      %839 = vmatpush1.bf16.msra.mxu0 %v831
      %840 = vmatprep.subr.bf16.mxu0 0
      %841 = vmatpush1.bf16.msra.mxu0 %v832
      %842 = vmatprep.subr.bf16.mxu0 0
      %843 = vmatpush1.bf16.msra.mxu0 0
      %844 = vmatprep.subr.bf16.mxu0 0
      %845 = vmatpush1.bf16.msra.mxu0 0
      %846 = vmatprep.subr.bf16.mxu0 0
      %847 = vmatpush1.bf16.msra.mxu0 0
      %848 = vmatprep.subr.bf16.mxu0 0
      %849 = vmatpush1.bf16.msra.mxu0 0
      %850 = vmatprep.subr.bf16.mxu0 0
      %851 = vmatpush1.bf16.msra.mxu0 0
      %852 = vmatprep.subr.bf16.mxu0 0
      %853 = vmatpush1.bf16.msra.mxu0 0
      %854 = vmatprep.subr.bf16.mxu0 0
      %855 = vmatpush1.bf16.msra.mxu0 0
      %856 = vmatprep.subr.bf16.mxu0 0
      %857 = vmatpush1.bf16.msra.mxu0 0
      %858 = vmatprep.subr.bf16.mxu0 0
      %859 = vmatpush1.bf16.msra.mxu0 0
      %860 = vmatprep.subr.bf16.mxu0 0
      %861 = vmatpush1.bf16.msra.mxu0 0
      %862 = vmatprep.subr.bf16.mxu0 0
      %863 = vmatpush1.bf16.msra.mxu0 0
      %864 = vmatprep.subr.bf16.mxu0 0
      %865 = vmatpush1.bf16.msra.mxu0 0
      %866 = vmatprep.subr.bf16.mxu0 0
      %867 = vmatpush1.bf16.msra.mxu0 0
      %868 = vmatprep.subr.bf16.mxu0 0
      %869 = vmatpush1.bf16.msra.mxu0 0
      %870 = vmatprep.mubr.bf16.mxu0 0
      %871 = vmatmul.mubr.bf16.gmra.mrb[0].mxu0 %v836
      %v872 = vpop.f32.mrb[0].mxu0
      %v873 = vadd.f32 %v821, %v872
      %v874 = vpop.f32.mrb[0].mxu0
      %v875 = vpop.f32.mrb[0].mxu0
      %v876 = vadd.f32 %v822, %v875
      %v877 = vpop.f32.mrb[0].mxu0
      %878 = vdwg.mxu0
      %v879 = vmax.f32 %v873, 0.0
      %v880 = vmax.f32 %v876, 0.0
      %v881 = vpack.c.bf16 %v811, %v811
      %v882 = vpack.c.bf16 %v876, %v873
      %v884 = vsel %vm545, %v881, 0
      %v887 = vsel %vm545, %v882, 0
      %889 = vmatprep.subr.bf16.mxu0 0
      %890 = vmatpush1.bf16.xpose.msra.mxu0 %v887
      %891 = vmatprep.subr.bf16.mxu0 0
      %892 = vmatpush1.bf16.xpose.msra.mxu0 0
      %893 = vmatprep.subr.bf16.mxu0 0
      %894 = vmatpush1.bf16.xpose.msra.mxu0 0
      %895 = vmatprep.subr.bf16.mxu0 0
      %896 = vmatpush1.bf16.xpose.msra.mxu0 0
      %897 = vmatprep.subr.bf16.mxu0 0
      %898 = vmatpush1.bf16.xpose.msra.mxu0 0
      %899 = vmatprep.subr.bf16.mxu0 0
      %900 = vmatpush1.bf16.xpose.msra.mxu0 0
      %901 = vmatprep.subr.bf16.mxu0 0
      %902 = vmatpush1.bf16.xpose.msra.mxu0 0
      %903 = vmatprep.subr.bf16.mxu0 0
      %904 = vmatpush1.bf16.xpose.msra.mxu0 0
      %905 = vmatprep.subr.bf16.mxu0 0
      %906 = vmatpush1.bf16.xpose.msra.mxu0 0
      %907 = vmatprep.subr.bf16.mxu0 0
      %908 = vmatpush1.bf16.xpose.msra.mxu0 0
      %909 = vmatprep.subr.bf16.mxu0 0
      %910 = vmatpush1.bf16.xpose.msra.mxu0 0
      %911 = vmatprep.subr.bf16.mxu0 0
      %912 = vmatpush1.bf16.xpose.msra.mxu0 0
      %913 = vmatprep.subr.bf16.mxu0 0
      %914 = vmatpush1.bf16.xpose.msra.mxu0 0
      %915 = vmatprep.subr.bf16.mxu0 0
      %916 = vmatpush1.bf16.xpose.msra.mxu0 0
      %917 = vmatprep.subr.bf16.mxu0 0
      %918 = vmatpush1.bf16.xpose.msra.mxu0 0
      %919 = vmatprep.subr.bf16.mxu0 0
      %920 = vmatpush1.bf16.xpose.msra.mxu0 0
      %921 = vmatprep.mubr.bf16.mxu0 0
      %922 = vmatmul.mubr.bf16.gmra.mrb[0].mxu0 %v884
      %v923 = vpop.f32.mrb[0].mxu0
      %v924 = vadd.f32 0.0, %v923
      %v925 = vpop.f32.mrb[0].mxu0
      %v926 = vpop.f32.mrb[0].mxu0
      %v927 = vpop.f32.mrb[0].mxu0
      %928 = vdwg.mxu0
      %vm929 = vcmask 130048
      %v930 = vsel %vm929, %v924, -inf
      %931 = vmax.xlane.f32.xlu0 %v930
      %v932 = vpop.xlane.xlu0 %931
      %v933 = vsub.f32 %v924, %v932
      %v934 = vmul.f32 %v933, 1.442695
      %v935 = vpow.pop %v934
      %v936 = vsel %vm929, %v935, 0.0
      %937 = vadd.xlane.f32.xlu0 %v936
      %v938 = vpop.xlane.xlu0 %937
      %v939 = vrcp.pop %v938
      %v940 = vmul.f32 %v935, %v939
      %v941 = vpack.c.bf16 %v940, %v940
      %943 = vrot.lane.b32.xlu0 %v882, 96
      %v944 = vpop.permute.xlu0 %943
      %v947 = vsel %vm929, %v941, 0
      %949 = vmatprep.subr.bf16.mxu0 0
      %950 = vmatpush1.bf16.msra.mxu0 %v944
      %951 = vmatprep.subr.bf16.mxu0 0
      %952 = vmatpush1.bf16.msra.mxu0 0
      %953 = vmatprep.subr.bf16.mxu0 0
      %954 = vmatpush1.bf16.msra.mxu0 0
      %955 = vmatprep.subr.bf16.mxu0 0
      %956 = vmatpush1.bf16.msra.mxu0 0
      %957 = vmatprep.subr.bf16.mxu0 0
      %958 = vmatpush1.bf16.msra.mxu0 0
      %959 = vmatprep.subr.bf16.mxu0 0
      %960 = vmatpush1.bf16.msra.mxu0 0
      %961 = vmatprep.subr.bf16.mxu0 0
      %962 = vmatpush1.bf16.msra.mxu0 0
      %963 = vmatprep.subr.bf16.mxu0 0
      %964 = vmatpush1.bf16.msra.mxu0 0
      %965 = vmatprep.subr.bf16.mxu0 0
      %966 = vmatpush1.bf16.msra.mxu0 0
      %967 = vmatprep.subr.bf16.mxu0 0
      %968 = vmatpush1.bf16.msra.mxu0 0
      %969 = vmatprep.subr.bf16.mxu0 0
      %970 = vmatpush1.bf16.msra.mxu0 0
      %971 = vmatprep.subr.bf16.mxu0 0
      %972 = vmatpush1.bf16.msra.mxu0 0
      %973 = vmatprep.subr.bf16.mxu0 0
      %974 = vmatpush1.bf16.msra.mxu0 0
      %975 = vmatprep.subr.bf16.mxu0 0
      %976 = vmatpush1.bf16.msra.mxu0 0
      %977 = vmatprep.subr.bf16.mxu0 0
      %978 = vmatpush1.bf16.msra.mxu0 0
      %979 = vmatprep.subr.bf16.mxu0 0
      %980 = vmatpush1.bf16.msra.mxu0 0
      %981 = vmatprep.mubr.bf16.mxu0 0
      %982 = vmatmul.mubr.bf16.gmra.mrb[0].mxu0 %v947
      %v983 = vpop.f32.mrb[0].mxu0
      %v984 = vadd.f32 0.0, %v983
      %v985 = vpop.f32.mrb[0].mxu0
      %v986 = vpop.f32.mrb[0].mxu0
      %v987 = vpop.f32.mrb[0].mxu0
      %988 = vdwg.mxu0
      %v989 = vld [vmem:[%s3 + $0x10] sm:$0xf]
      %v990 = vld [vmem:[%s3 + $0x34] sm:$0xf]
      %v991 = vld [vmem:[%s3 + $0x58] sm:$0xf]
      %v992 = vld [vmem:[%s3 + $0x7c] sm:$0xf]
      %v993 = vpack.c.bf16 %v984, %v984
      %v998 = vunpack.c.l.b16 %v989
      %v999 = vunpack.c.l.b16 %v990
      %v1000 = vunpack.c.l.b16 %v991
      %v1001 = vunpack.c.l.b16 %v992
      %v1002 = vpack.c.b16 %v999, %v998
      %v1003 = vpack.c.b16 %v1001, %v1000
      %v1007 = vsel %vm545, %v993, 0
      %1009 = vmatprep.subr.bf16.mxu0 0
      %1010 = vmatpush1.bf16.msra.mxu0 %v1002
      %1011 = vmatprep.subr.bf16.mxu0 0
      %1012 = vmatpush1.bf16.msra.mxu0 %v1003
      %1013 = vmatprep.subr.bf16.mxu0 0
      %1014 = vmatpush1.bf16.msra.mxu0 0
      %1015 = vmatprep.subr.bf16.mxu0 0
      %1016 = vmatpush1.bf16.msra.mxu0 0
      %1017 = vmatprep.subr.bf16.mxu0 0
      %1018 = vmatpush1.bf16.msra.mxu0 0
      %1019 = vmatprep.subr.bf16.mxu0 0
      %1020 = vmatpush1.bf16.msra.mxu0 0
      %1021 = vmatprep.subr.bf16.mxu0 0
      %1022 = vmatpush1.bf16.msra.mxu0 0
      %1023 = vmatprep.subr.bf16.mxu0 0
      %1024 = vmatpush1.bf16.msra.mxu0 0
      %1025 = vmatprep.subr.bf16.mxu0 0
      %1026 = vmatpush1.bf16.msra.mxu0 0
      %1027 = vmatprep.subr.bf16.mxu0 0
      %1028 = vmatpush1.bf16.msra.mxu0 0
      %1029 = vmatprep.subr.bf16.mxu0 0
      %1030 = vmatpush1.bf16.msra.mxu0 0
      %1031 = vmatprep.subr.bf16.mxu0 0
      %1032 = vmatpush1.bf16.msra.mxu0 0
      %1033 = vmatprep.subr.bf16.mxu0 0
      %1034 = vmatpush1.bf16.msra.mxu0 0
      %1035 = vmatprep.subr.bf16.mxu0 0
      %1036 = vmatpush1.bf16.msra.mxu0 0
      %1037 = vmatprep.subr.bf16.mxu0 0
      %1038 = vmatpush1.bf16.msra.mxu0 0
      %1039 = vmatprep.subr.bf16.mxu0 0
      %1040 = vmatpush1.bf16.msra.mxu0 0
      %1041 = vmatprep.mubr.bf16.mxu0 0
      %1042 = vmatmul.mubr.bf16.gmra.mrb[0].mxu0 %v1007
      %v1043 = vpop.f32.mrb[0].mxu0
      %v1044 = vadd.f32 0.0, %v1043
      %v1045 = vpop.f32.mrb[0].mxu0
      %v1046 = vpop.f32.mrb[0].mxu0
      %v1047 = vpop.f32.mrb[0].mxu0
      %1048 = vdwg.mxu0
      %v1049 = vadd.f32 %v748, %v1044
      %v1050 = vld [vmem:[%s5 + $0x5] sm:$0x1]
      %v1052 = vlaneseq
      %v1053 = vshrl.u32 %v1052, 7
      %v1054 = vsub.s32 0, %v1053
      %v1055 = vrot.slane %v1050, %v1054
      %v1057 = vadd.f32 %v1049, %v1055
      %v1058 = vld [vmem:[%s3 + $0x14] sm:$0xf]
      %v1059 = vld [vmem:[%s3 + $0x38] sm:$0xf]
      %v1060 = vld [vmem:[%s3 + $0x5c] sm:$0xf]
      %v1061 = vld [vmem:[%s3 + $0x80] sm:$0xf]
      %v1062 = vpack.c.bf16 %v1057, %v1057
      %v1063 = vld [vmem:[%s5 + $0x6] sm:$0x1]
      %v1065 = vlaneseq
      %v1066 = vshrl.u32 %v1065, 7
      %v1067 = vsub.s32 0, %v1066
      %v1068 = vrot.slane %v1063, %v1067
      %v1074 = vunpack.c.l.b16 %v1058
      %v1075 = vunpack.c.l.b16 %v1059
      %v1076 = vunpack.c.l.b16 %v1060
      %v1077 = vunpack.c.l.b16 %v1061
      %v1078 = vpack.c.b16 %v1075, %v1074
      %v1079 = vpack.c.b16 %v1077, %v1076
      %v1083 = vsel %vm545, %v1062, 0
      %1085 = vmatprep.subr.bf16.mxu0 0
      %1086 = vmatpush1.bf16.msra.mxu0 %v1078
      %1087 = vmatprep.subr.bf16.mxu0 0
      %1088 = vmatpush1.bf16.msra.mxu0 %v1079
      %1089 = vmatprep.subr.bf16.mxu0 0
      %1090 = vmatpush1.bf16.msra.mxu0 0
      %1091 = vmatprep.subr.bf16.mxu0 0
      %1092 = vmatpush1.bf16.msra.mxu0 0
      %1093 = vmatprep.subr.bf16.mxu0 0
      %1094 = vmatpush1.bf16.msra.mxu0 0
      %1095 = vmatprep.subr.bf16.mxu0 0
      %1096 = vmatpush1.bf16.msra.mxu0 0
      %1097 = vmatprep.subr.bf16.mxu0 0
      %1098 = vmatpush1.bf16.msra.mxu0 0
      %1099 = vmatprep.subr.bf16.mxu0 0
      %1100 = vmatpush1.bf16.msra.mxu0 0
      %1101 = vmatprep.subr.bf16.mxu0 0
      %1102 = vmatpush1.bf16.msra.mxu0 0
      %1103 = vmatprep.subr.bf16.mxu0 0
      %1104 = vmatpush1.bf16.msra.mxu0 0
      %1105 = vmatprep.subr.bf16.mxu0 0
      %1106 = vmatpush1.bf16.msra.mxu0 0
      %1107 = vmatprep.subr.bf16.mxu0 0
      %1108 = vmatpush1.bf16.msra.mxu0 0
      %1109 = vmatprep.subr.bf16.mxu0 0
      %1110 = vmatpush1.bf16.msra.mxu0 0
      %1111 = vmatprep.subr.bf16.mxu0 0
      %1112 = vmatpush1.bf16.msra.mxu0 0
      %1113 = vmatprep.subr.bf16.mxu0 0
      %1114 = vmatpush1.bf16.msra.mxu0 0
      %1115 = vmatprep.subr.bf16.mxu0 0
      %1116 = vmatpush1.bf16.msra.mxu0 0
      %1117 = vmatprep.mubr.bf16.mxu0 0
      %1118 = vmatmul.mubr.bf16.gmra.mrb[0].mxu0 %v1083
      %v1119 = vpop.f32.mrb[0].mxu0
      %v1120 = vadd.f32 %v1068, %v1119
      %v1121 = vpop.f32.mrb[0].mxu0
      %v1122 = vpop.f32.mrb[0].mxu0
      %v1123 = vpop.f32.mrb[0].mxu0
      %1124 = vdwg.mxu0
      %v1125 = vmax.f32 %v1120, 0.0
      %v1126 = vld [vmem:[%s4 + $0x4] sm:$0xf]
      %v1127 = vld [vmem:[%s4 + $0xc] sm:$0xf]
      %v1128 = vld [vmem:[%s4 + $0x14] sm:$0xf]
      %v1129 = vld [vmem:[%s4 + $0x1c] sm:$0xf]
      %v1130 = vld [vmem:[%s4 + $0x24] sm:$0xf]
      %v1131 = vld [vmem:[%s4 + $0x2c] sm:$0xf]
      %v1132 = vld [vmem:[%s4 + $0x34] sm:$0xf]
      %v1133 = vld [vmem:[%s4 + $0x3c] sm:$0xf]
      %v1134 = vpack.c.bf16 %v1125, %v1125
      %v1143 = vunpack.c.l.b16 %v1126
      %v1144 = vunpack.c.l.b16 %v1127
      %v1145 = vunpack.c.l.b16 %v1128
      %v1146 = vunpack.c.l.b16 %v1129
      %v1147 = vunpack.c.l.b16 %v1130
      %v1148 = vunpack.c.l.b16 %v1131
      %v1149 = vunpack.c.l.b16 %v1132
      %v1150 = vunpack.c.l.b16 %v1133
      %v1151 = vpack.c.b16 %v1144, %v1143
      %v1152 = vpack.c.b16 %v1146, %v1145
      %v1153 = vpack.c.b16 %v1148, %v1147
      %v1154 = vpack.c.b16 %v1150, %v1149
      %v1160 = vsel %vm476, %v1134, 0
      %1162 = vmatprep.subr.bf16.mxu0 0
      %1163 = vmatpush1.bf16.msra.mxu0 %v1151
      %1164 = vmatprep.subr.bf16.mxu0 0
      %1165 = vmatpush1.bf16.msra.mxu0 %v1152
      %1166 = vmatprep.subr.bf16.mxu0 0
      %1167 = vmatpush1.bf16.msra.mxu0 %v1153
      %1168 = vmatprep.subr.bf16.mxu0 0
      %1169 = vmatpush1.bf16.msra.mxu0 %v1154
      %1170 = vmatprep.subr.bf16.mxu0 0
      %1171 = vmatpush1.bf16.msra.mxu0 0
      %1172 = vmatprep.subr.bf16.mxu0 0
      %1173 = vmatpush1.bf16.msra.mxu0 0
      %1174 = vmatprep.subr.bf16.mxu0 0
      %1175 = vmatpush1.bf16.msra.mxu0 0
      %1176 = vmatprep.subr.bf16.mxu0 0
      %1177 = vmatpush1.bf16.msra.mxu0 0
      %1178 = vmatprep.subr.bf16.mxu0 0
      %1179 = vmatpush1.bf16.msra.mxu0 0
      %1180 = vmatprep.subr.bf16.mxu0 0
      %1181 = vmatpush1.bf16.msra.mxu0 0
      %1182 = vmatprep.subr.bf16.mxu0 0
      %1183 = vmatpush1.bf16.msra.mxu0 0
      %1184 = vmatprep.subr.bf16.mxu0 0
      %1185 = vmatpush1.bf16.msra.mxu0 0
      %1186 = vmatprep.subr.bf16.mxu0 0
      %1187 = vmatpush1.bf16.msra.mxu0 0
      %1188 = vmatprep.subr.bf16.mxu0 0
      %1189 = vmatpush1.bf16.msra.mxu0 0
      %1190 = vmatprep.subr.bf16.mxu0 0
      %1191 = vmatpush1.bf16.msra.mxu0 0
      %1192 = vmatprep.subr.bf16.mxu0 0
      %1193 = vmatpush1.bf16.msra.mxu0 0
      %1194 = vmatprep.mubr.bf16.mxu0 0
      %1195 = vmatmul.mubr.bf16.gmra.mrb[0].mxu0 %v1160
      %v1196 = vpop.f32.mrb[0].mxu0
      %v1197 = vadd.f32 0.0, %v1196
      %v1198 = vpop.f32.mrb[0].mxu0
      %v1199 = vpop.f32.mrb[0].mxu0
      %v1200 = vpop.f32.mrb[0].mxu0
      %1201 = vdwg.mxu0
      %v1202 = vadd.f32 %v1057, %v1197
      %v1203 = vld [vmem:[%s5 + $0x7] sm:$0x1]
      %v1205 = vlaneseq
      %v1206 = vshrl.u32 %v1205, 7
      %v1207 = vsub.s32 0, %v1206
      %v1208 = vrot.slane %v1203, %v1207
      %v1210 = vadd.f32 %v1202, %v1208
      %v1211 = vld [vmem:[%s3 + $0x18] sm:$0xf]
      %v1212 = vld [vmem:[%s3 + $0x3c] sm:$0xf]
      %v1213 = vld [vmem:[%s3 + $0x60] sm:$0xf]
      %v1214 = vld [vmem:[%s3 + $0x84] sm:$0xf]
      %v1215 = vpack.c.bf16 %v1210, %v1210
      %v1216 = vld [vmem:[%s5 + $0x8] sm:$0x1]
      %v1218 = vlaneseq
      %v1219 = vshrl.u32 %v1218, 7
      %v1220 = vsub.s32 0, %v1219
      %v1221 = vrot.slane %v1216, %v1220
      %v1227 = vunpack.c.l.b16 %v1211
      %v1228 = vunpack.c.l.b16 %v1212
      %v1229 = vunpack.c.l.b16 %v1213
      %v1230 = vunpack.c.l.b16 %v1214
      %v1231 = vpack.c.b16 %v1228, %v1227
      %v1232 = vpack.c.b16 %v1230, %v1229
      %v1236 = vsel %vm545, %v1215, 0
      %1238 = vmatprep.subr.bf16.mxu0 0
      %1239 = vmatpush1.bf16.msra.mxu0 %v1231
      %1240 = vmatprep.subr.bf16.mxu0 0
      %1241 = vmatpush1.bf16.msra.mxu0 %v1232
      %1242 = vmatprep.subr.bf16.mxu0 0
      %1243 = vmatpush1.bf16.msra.mxu0 0
      %1244 = vmatprep.subr.bf16.mxu0 0
      %1245 = vmatpush1.bf16.msra.mxu0 0
      %1246 = vmatprep.subr.bf16.mxu0 0
      %1247 = vmatpush1.bf16.msra.mxu0 0
      %1248 = vmatprep.subr.bf16.mxu0 0
      %1249 = vmatpush1.bf16.msra.mxu0 0
      %1250 = vmatprep.subr.bf16.mxu0 0
      %1251 = vmatpush1.bf16.msra.mxu0 0
      %1252 = vmatprep.subr.bf16.mxu0 0
      %1253 = vmatpush1.bf16.msra.mxu0 0
      %1254 = vmatprep.subr.bf16.mxu0 0
      %1255 = vmatpush1.bf16.msra.mxu0 0
      %1256 = vmatprep.subr.bf16.mxu0 0
      %1257 = vmatpush1.bf16.msra.mxu0 0
      %1258 = vmatprep.subr.bf16.mxu0 0
      %1259 = vmatpush1.bf16.msra.mxu0 0
      %1260 = vmatprep.subr.bf16.mxu0 0
      %1261 = vmatpush1.bf16.msra.mxu0 0
      %1262 = vmatprep.subr.bf16.mxu0 0
      %1263 = vmatpush1.bf16.msra.mxu0 0
      %1264 = vmatprep.subr.bf16.mxu0 0
      %1265 = vmatpush1.bf16.msra.mxu0 0
      %1266 = vmatprep.subr.bf16.mxu0 0
      %1267 = vmatpush1.bf16.msra.mxu0 0
      %1268 = vmatprep.subr.bf16.mxu0 0
      %1269 = vmatpush1.bf16.msra.mxu0 0
      %1270 = vmatprep.mubr.bf16.mxu0 0
      %1271 = vmatmul.mubr.bf16.gmra.mrb[0].mxu0 %v1236
      %v1272 = vpop.f32.mrb[0].mxu0
      %v1273 = vadd.f32 %v1221, %v1272
      %v1274 = vpop.f32.mrb[0].mxu0
      %v1275 = vpop.f32.mrb[0].mxu0
      %v1276 = vpop.f32.mrb[0].mxu0
      %1277 = vdwg.mxu0
      %v1278 = vmax.f32 %v1273, 0.0
      %v1279 = vld [vmem:[%s3 + $0x1c] sm:$0xf]
      %v1280 = vld [vmem:[%s3 + $0x40] sm:$0xf]
      %v1281 = vld [vmem:[%s3 + $0x64] sm:$0xf]
      %v1282 = vld [vmem:[%s3 + $0x88] sm:$0xf]
      %v1283 = vpack.c.bf16 %v1278, %v1278
      %v1284 = vld [vmem:[%s5 + $0x9] sm:$0x1]
      %v1286 = vlaneseq
      %v1287 = vshrl.u32 %v1286, 7
      %v1288 = vsub.s32 0, %v1287
      %v1289 = vrot.slane %v1284, %v1288
      %v1292 = vrot.slane %v1283, 1
      %v1297 = vunpack.c.l.b16 %v1279
      %v1298 = vunpack.c.l.b16 %v1280
      %v1299 = vunpack.c.l.b16 %v1281
      %v1300 = vunpack.c.l.b16 %v1282
      %v1301 = vpack.c.b16 %v1298, %v1297
      %v1302 = vpack.c.b16 %v1300, %v1299
      %v1306 = vsel %vm545, %v1292, 0
      %1308 = vmatprep.subr.bf16.mxu0 0
      %1309 = vmatpush1.bf16.msra.mxu0 %v1301
      %1310 = vmatprep.subr.bf16.mxu0 0
      %1311 = vmatpush1.bf16.msra.mxu0 %v1302
      %1312 = vmatprep.subr.bf16.mxu0 0
      %1313 = vmatpush1.bf16.msra.mxu0 0
      %1314 = vmatprep.subr.bf16.mxu0 0
      %1315 = vmatpush1.bf16.msra.mxu0 0
      %1316 = vmatprep.subr.bf16.mxu0 0
      %1317 = vmatpush1.bf16.msra.mxu0 0
      %1318 = vmatprep.subr.bf16.mxu0 0
      %1319 = vmatpush1.bf16.msra.mxu0 0
      %1320 = vmatprep.subr.bf16.mxu0 0
      %1321 = vmatpush1.bf16.msra.mxu0 0
      %1322 = vmatprep.subr.bf16.mxu0 0
      %1323 = vmatpush1.bf16.msra.mxu0 0
      %1324 = vmatprep.subr.bf16.mxu0 0
      %1325 = vmatpush1.bf16.msra.mxu0 0
      %1326 = vmatprep.subr.bf16.mxu0 0
      %1327 = vmatpush1.bf16.msra.mxu0 0
      %1328 = vmatprep.subr.bf16.mxu0 0
      %1329 = vmatpush1.bf16.msra.mxu0 0
      %1330 = vmatprep.subr.bf16.mxu0 0
      %1331 = vmatpush1.bf16.msra.mxu0 0
      %1332 = vmatprep.subr.bf16.mxu0 0
      %1333 = vmatpush1.bf16.msra.mxu0 0
      %1334 = vmatprep.subr.bf16.mxu0 0
      %1335 = vmatpush1.bf16.msra.mxu0 0
      %1336 = vmatprep.subr.bf16.mxu0 0
      %1337 = vmatpush1.bf16.msra.mxu0 0
      %1338 = vmatprep.subr.bf16.mxu0 0
      %1339 = vmatpush1.bf16.msra.mxu0 0
      %1340 = vmatprep.mubr.bf16.mxu0 0
      %1341 = vmatmul.mubr.bf16.gmra.mrb[0].mxu0 %v1306
      %v1342 = vpop.f32.mrb[0].mxu0
      %v1343 = vadd.f32 %v1289, %v1342
      %v1344 = vpop.f32.mrb[0].mxu0
      %v1345 = vpop.f32.mrb[0].mxu0
      %v1346 = vpop.f32.mrb[0].mxu0
      %1347 = vdwg.mxu0
      %v1348 = vld [vmem:[%s3 + $0x20] sm:$0xf]
      %v1349 = vld [vmem:[%s3 + $0x44] sm:$0xf]
      %v1350 = vld [vmem:[%s3 + $0x68] sm:$0xf]
      %v1351 = vld [vmem:[%s3 + $0x8c] sm:$0xf]
      %v1352 = vld [vmem:[%s5 + $0xa] sm:$0x1]
      %v1354 = vlaneseq
      %v1355 = vshrl.u32 %v1354, 7
      %v1356 = vsub.s32 0, %v1355
      %v1357 = vrot.slane %v1352, %v1356
      %1359 = vrot.lane.b32.xlu0 %v1283, 96
      %v1360 = vpop.permute.xlu0 %1359
      %v1365 = vunpack.c.l.b16 %v1348
      %v1366 = vunpack.c.l.b16 %v1349
      %v1367 = vunpack.c.l.b16 %v1350
      %v1368 = vunpack.c.l.b16 %v1351
      %v1369 = vpack.c.b16 %v1366, %v1365
      %v1370 = vpack.c.b16 %v1368, %v1367
      %v1374 = vsel %vm545, %v1360, 0
      %1376 = vmatprep.subr.bf16.mxu0 0
      %1377 = vmatpush1.bf16.msra.mxu0 %v1369
      %1378 = vmatprep.subr.bf16.mxu0 0
      %1379 = vmatpush1.bf16.msra.mxu0 %v1370
      %1380 = vmatprep.subr.bf16.mxu0 0
      %1381 = vmatpush1.bf16.msra.mxu0 0
      %1382 = vmatprep.subr.bf16.mxu0 0
      %1383 = vmatpush1.bf16.msra.mxu0 0
      %1384 = vmatprep.subr.bf16.mxu0 0
      %1385 = vmatpush1.bf16.msra.mxu0 0
      %1386 = vmatprep.subr.bf16.mxu0 0
      %1387 = vmatpush1.bf16.msra.mxu0 0
      %1388 = vmatprep.subr.bf16.mxu0 0
      %1389 = vmatpush1.bf16.msra.mxu0 0
      %1390 = vmatprep.subr.bf16.mxu0 0
      %1391 = vmatpush1.bf16.msra.mxu0 0
      %1392 = vmatprep.subr.bf16.mxu0 0
      %1393 = vmatpush1.bf16.msra.mxu0 0
      %1394 = vmatprep.subr.bf16.mxu0 0
      %1395 = vmatpush1.bf16.msra.mxu0 0
      %1396 = vmatprep.subr.bf16.mxu0 0
      %1397 = vmatpush1.bf16.msra.mxu0 0
      %1398 = vmatprep.subr.bf16.mxu0 0
      %1399 = vmatpush1.bf16.msra.mxu0 0
      %1400 = vmatprep.subr.bf16.mxu0 0
      %1401 = vmatpush1.bf16.msra.mxu0 0
      %1402 = vmatprep.subr.bf16.mxu0 0
      %1403 = vmatpush1.bf16.msra.mxu0 0
      %1404 = vmatprep.subr.bf16.mxu0 0
      %1405 = vmatpush1.bf16.msra.mxu0 0
      %1406 = vmatprep.subr.bf16.mxu0 0
      %1407 = vmatpush1.bf16.msra.mxu0 0
      %1408 = vmatprep.mubr.bf16.mxu0 0
      %1409 = vmatmul.mubr.bf16.gmra.mrb[0].mxu0 %v1374
      %v1410 = vpop.f32.mrb[0].mxu0
      %v1411 = vadd.f32 %v1357, %v1410
      %v1412 = vpop.f32.mrb[0].mxu0
      %v1413 = vpop.f32.mrb[0].mxu0
      %v1414 = vpop.f32.mrb[0].mxu0
      %1415 = vdwg.mxu0
      %vm1416 = vcmask 1024
      %1417 = vst.msk [vmem:[%s360] sm:$0x3] %vm1416, %v1411
      %v1418 = vpack.c.bf16 %v1343, %v1343
      %v1419 = vpack.c.bf16 %v880, %v879
      %1421 = vrot.lane.b32.xlu0 %v1419, 64
      %v1422 = vpop.permute.xlu0 %1421
      %vm1423 = vcmask 64512
      %v1425 = vsel %vm1423, %v1418, 0
      %v1428 = vsel %vm1423, %v1422, 0
      %1430 = vmatprep.subr.bf16.mxu0 0
      %1431 = vmatpush1.bf16.xpose.msra.mxu0 %v1428
      %1432 = vmatprep.subr.bf16.mxu0 0
      %1433 = vmatpush1.bf16.xpose.msra.mxu0 0
      %1434 = vmatprep.subr.bf16.mxu0 0
      %1435 = vmatpush1.bf16.xpose.msra.mxu0 0
      %1436 = vmatprep.subr.bf16.mxu0 0
      %1437 = vmatpush1.bf16.xpose.msra.mxu0 0
      %1438 = vmatprep.subr.bf16.mxu0 0
      %1439 = vmatpush1.bf16.xpose.msra.mxu0 0
      %1440 = vmatprep.subr.bf16.mxu0 0
      %1441 = vmatpush1.bf16.xpose.msra.mxu0 0
      %1442 = vmatprep.subr.bf16.mxu0 0
      %1443 = vmatpush1.bf16.xpose.msra.mxu0 0
      %1444 = vmatprep.subr.bf16.mxu0 0
      %1445 = vmatpush1.bf16.xpose.msra.mxu0 0
      %1446 = vmatprep.subr.bf16.mxu0 0
      %1447 = vmatpush1.bf16.xpose.msra.mxu0 0
      %1448 = vmatprep.subr.bf16.mxu0 0
      %1449 = vmatpush1.bf16.xpose.msra.mxu0 0
      %1450 = vmatprep.subr.bf16.mxu0 0
      %1451 = vmatpush1.bf16.xpose.msra.mxu0 0
      %1452 = vmatprep.subr.bf16.mxu0 0
      %1453 = vmatpush1.bf16.xpose.msra.mxu0 0
      %1454 = vmatprep.subr.bf16.mxu0 0
      %1455 = vmatpush1.bf16.xpose.msra.mxu0 0
      %1456 = vmatprep.subr.bf16.mxu0 0
      %1457 = vmatpush1.bf16.xpose.msra.mxu0 0
      %1458 = vmatprep.subr.bf16.mxu0 0
      %1459 = vmatpush1.bf16.xpose.msra.mxu0 0
      %1460 = vmatprep.subr.bf16.mxu0 0
      %1461 = vmatpush1.bf16.xpose.msra.mxu0 0
      %1462 = vmatprep.mubr.bf16.mxu0 0
      %1463 = vmatmul.mubr.bf16.gmra.mrb[0].mxu0 %v1425
      %v1464 = vpop.f32.mrb[0].mxu0
      %v1465 = vadd.f32 0.0, %v1464
      %v1466 = vpop.f32.mrb[0].mxu0
      %v1467 = vpop.f32.mrb[0].mxu0
      %v1468 = vpop.f32.mrb[0].mxu0
      %1469 = vdwg.mxu0
      %v1470 = vld [vmem:[%s7] sm:$0xff]
      %v1471 = vld [vmem:[%s7 + $0x8] sm:$0xff]
      %v1472 = vld [vmem:[%s7 + $0x10] sm:$0xff]
      %v1473 = vld [vmem:[%s7 + $0x18] sm:$0xff]
      %v1474 = vld [vmem:[%s7 + $0x20] sm:$0xff]
      %v1475 = vld [vmem:[%s7 + $0x28] sm:$0xff]
      %v1476 = vld [vmem:[%s7 + $0x30] sm:$0xff]
      %v1477 = vld [vmem:[%s7 + $0x38] sm:$0xff]
      %v1478 = vpack.c.bf16 %v1465, %v1465
      %v1487 = vunpack.c.l.b16 %v1470
      %v1488 = vunpack.c.h.b16 %v1470
      %v1489 = vunpack.c.l.b16 %v1471
      %v1490 = vunpack.c.h.b16 %v1471
      %v1491 = vunpack.c.l.b16 %v1472
      %v1492 = vunpack.c.h.b16 %v1472
      %v1493 = vunpack.c.l.b16 %v1473
      %v1494 = vunpack.c.h.b16 %v1473
      %v1495 = vunpack.c.l.b16 %v1474
      %v1496 = vunpack.c.h.b16 %v1474
      %v1497 = vunpack.c.l.b16 %v1475
      %v1498 = vunpack.c.h.b16 %v1475
      %v1499 = vunpack.c.l.b16 %v1476
      %v1500 = vunpack.c.h.b16 %v1476
      %v1501 = vunpack.c.l.b16 %v1477
      %v1502 = vunpack.c.h.b16 %v1477
      %v1503 = vpack.c.b16 %v1495, %v1487
      %v1504 = vpack.c.b16 %v1496, %v1488
      %v1505 = vpack.c.b16 %v1497, %v1489
      %v1506 = vpack.c.b16 %v1498, %v1490
      %v1507 = vpack.c.b16 %v1499, %v1491
      %v1508 = vpack.c.b16 %v1500, %v1492
      %v1509 = vpack.c.b16 %v1501, %v1493
      %v1510 = vpack.c.b16 %v1502, %v1494
      %v1520 = vsel %vm929, %v1478, 0
      %1522 = vmatprep.subr.bf16.mxu0 %v1504
      %1523 = vmatpush1.bf16.msra.mxu0 %v1503
      %1524 = vmatprep.subr.bf16.mxu0 0
      %1525 = vmatpush1.bf16.msra.mxu0 0
      %1526 = vmatprep.subr.bf16.mxu0 0
      %1527 = vmatpush1.bf16.msra.mxu0 0
      %1528 = vmatprep.subr.bf16.mxu0 0
      %1529 = vmatpush1.bf16.msra.mxu0 0
      %1530 = vmatprep.subr.bf16.mxu0 0
      %1531 = vmatpush1.bf16.msra.mxu0 0
      %1532 = vmatprep.subr.bf16.mxu0 0
      %1533 = vmatpush1.bf16.msra.mxu0 0
      %1534 = vmatprep.subr.bf16.mxu0 0
      %1535 = vmatpush1.bf16.msra.mxu0 0
      %1536 = vmatprep.subr.bf16.mxu0 0
      %1537 = vmatpush1.bf16.msra.mxu0 0
      %1538 = vmatprep.subr.bf16.mxu0 0
      %1539 = vmatpush1.bf16.msra.mxu0 0
      %1540 = vmatprep.subr.bf16.mxu0 0
      %1541 = vmatpush1.bf16.msra.mxu0 0
      %1542 = vmatprep.subr.bf16.mxu0 0
      %1543 = vmatpush1.bf16.msra.mxu0 0
      %1544 = vmatprep.subr.bf16.mxu0 0
      %1545 = vmatpush1.bf16.msra.mxu0 0
      %1546 = vmatprep.subr.bf16.mxu0 0
      %1547 = vmatpush1.bf16.msra.mxu0 0
      %1548 = vmatprep.subr.bf16.mxu0 0
      %1549 = vmatpush1.bf16.msra.mxu0 0
      %1550 = vmatprep.subr.bf16.mxu0 0
      %1551 = vmatpush1.bf16.msra.mxu0 0
      %1552 = vmatprep.subr.bf16.mxu0 0
      %1553 = vmatpush1.bf16.msra.mxu0 0
      %1554 = vmatprep.mubr.bf16.mxu0 0
      %1555 = vmatmul.mubr.bf16.gmra.mrb[0].mxu0 %v1520
      %v1556 = vpop.f32.mrb[0].mxu0
      %v1557 = vadd.f32 0.0, %v1556
      %v1558 = vpop.f32.mrb[0].mxu0
      %v1559 = vadd.f32 0.0, %v1558
      %v1560 = vpop.f32.mrb[0].mxu0
      %v1561 = vpop.f32.mrb[0].mxu0
      %1562 = vdwg.mxu0
      %1563 = vmatprep.subr.bf16.mxu0 %v1506
      %1564 = vmatpush1.bf16.msra.mxu0 %v1505
      %1565 = vmatprep.subr.bf16.mxu0 0
      %1566 = vmatpush1.bf16.msra.mxu0 0
      %1567 = vmatprep.subr.bf16.mxu0 0
      %1568 = vmatpush1.bf16.msra.mxu0 0
      %1569 = vmatprep.subr.bf16.mxu0 0
      %1570 = vmatpush1.bf16.msra.mxu0 0
      %1571 = vmatprep.subr.bf16.mxu0 0
      %1572 = vmatpush1.bf16.msra.mxu0 0
      %1573 = vmatprep.subr.bf16.mxu0 0
      %1574 = vmatpush1.bf16.msra.mxu0 0
      %1575 = vmatprep.subr.bf16.mxu0 0
      %1576 = vmatpush1.bf16.msra.mxu0 0
      %1577 = vmatprep.subr.bf16.mxu0 0
      %1578 = vmatpush1.bf16.msra.mxu0 0
      %1579 = vmatprep.subr.bf16.mxu0 0
      %1580 = vmatpush1.bf16.msra.mxu0 0
      %1581 = vmatprep.subr.bf16.mxu0 0
      %1582 = vmatpush1.bf16.msra.mxu0 0
      %1583 = vmatprep.subr.bf16.mxu0 0
      %1584 = vmatpush1.bf16.msra.mxu0 0
      %1585 = vmatprep.subr.bf16.mxu0 0
      %1586 = vmatpush1.bf16.msra.mxu0 0
      %1587 = vmatprep.subr.bf16.mxu0 0
      %1588 = vmatpush1.bf16.msra.mxu0 0
      %1589 = vmatprep.subr.bf16.mxu0 0
      %1590 = vmatpush1.bf16.msra.mxu0 0
      %1591 = vmatprep.subr.bf16.mxu0 0
      %1592 = vmatpush1.bf16.msra.mxu0 0
      %1593 = vmatprep.subr.bf16.mxu0 0
      %1594 = vmatpush1.bf16.msra.mxu0 0
      %1595 = vmatprep.mubr.bf16.mxu0 0
      %1596 = vmatmul.mubr.bf16.gmra.mrb[0].mxu0 %v1520
      %v1597 = vpop.f32.mrb[0].mxu0
      %v1598 = vadd.f32 0.0, %v1597
      %v1599 = vpop.f32.mrb[0].mxu0
      %v1600 = vadd.f32 0.0, %v1599
      %v1601 = vpop.f32.mrb[0].mxu0
      %v1602 = vpop.f32.mrb[0].mxu0
      %1603 = vdwg.mxu0
      %1604 = vmatprep.subr.bf16.mxu0 %v1508
      %1605 = vmatpush1.bf16.msra.mxu0 %v1507
      %1606 = vmatprep.subr.bf16.mxu0 0
      %1607 = vmatpush1.bf16.msra.mxu0 0
      %1608 = vmatprep.subr.bf16.mxu0 0
      %1609 = vmatpush1.bf16.msra.mxu0 0
      %1610 = vmatprep.subr.bf16.mxu0 0
      %1611 = vmatpush1.bf16.msra.mxu0 0
      %1612 = vmatprep.subr.bf16.mxu0 0
      %1613 = vmatpush1.bf16.msra.mxu0 0
      %1614 = vmatprep.subr.bf16.mxu0 0
      %1615 = vmatpush1.bf16.msra.mxu0 0
      %1616 = vmatprep.subr.bf16.mxu0 0
      %1617 = vmatpush1.bf16.msra.mxu0 0
      %1618 = vmatprep.subr.bf16.mxu0 0
      %1619 = vmatpush1.bf16.msra.mxu0 0
      %1620 = vmatprep.subr.bf16.mxu0 0
      %1621 = vmatpush1.bf16.msra.mxu0 0
      %1622 = vmatprep.subr.bf16.mxu0 0
      %1623 = vmatpush1.bf16.msra.mxu0 0
      %1624 = vmatprep.subr.bf16.mxu0 0
      %1625 = vmatpush1.bf16.msra.mxu0 0
      %1626 = vmatprep.subr.bf16.mxu0 0
      %1627 = vmatpush1.bf16.msra.mxu0 0
      %1628 = vmatprep.subr.bf16.mxu0 0
      %1629 = vmatpush1.bf16.msra.mxu0 0
      %1630 = vmatprep.subr.bf16.mxu0 0
      %1631 = vmatpush1.bf16.msra.mxu0 0
      %1632 = vmatprep.subr.bf16.mxu0 0
      %1633 = vmatpush1.bf16.msra.mxu0 0
      %1634 = vmatprep.subr.bf16.mxu0 0
      %1635 = vmatpush1.bf16.msra.mxu0 0
      %1636 = vmatprep.mubr.bf16.mxu0 0
      %1637 = vmatmul.mubr.bf16.gmra.mrb[0].mxu0 %v1520
      %v1638 = vpop.f32.mrb[0].mxu0
      %v1639 = vadd.f32 0.0, %v1638
      %v1640 = vpop.f32.mrb[0].mxu0
      %v1641 = vadd.f32 0.0, %v1640
      %v1642 = vpop.f32.mrb[0].mxu0
      %v1643 = vpop.f32.mrb[0].mxu0
      %1644 = vdwg.mxu0
      %1645 = vmatprep.subr.bf16.mxu0 %v1510
      %1646 = vmatpush1.bf16.msra.mxu0 %v1509
      %1647 = vmatprep.subr.bf16.mxu0 0
      %1648 = vmatpush1.bf16.msra.mxu0 0
      %1649 = vmatprep.subr.bf16.mxu0 0
      %1650 = vmatpush1.bf16.msra.mxu0 0
      %1651 = vmatprep.subr.bf16.mxu0 0
      %1652 = vmatpush1.bf16.msra.mxu0 0
      %1653 = vmatprep.subr.bf16.mxu0 0
      %1654 = vmatpush1.bf16.msra.mxu0 0
      %1655 = vmatprep.subr.bf16.mxu0 0
      %1656 = vmatpush1.bf16.msra.mxu0 0
      %1657 = vmatprep.subr.bf16.mxu0 0
      %1658 = vmatpush1.bf16.msra.mxu0 0
      %1659 = vmatprep.subr.bf16.mxu0 0
      %1660 = vmatpush1.bf16.msra.mxu0 0
      %1661 = vmatprep.subr.bf16.mxu0 0
      %1662 = vmatpush1.bf16.msra.mxu0 0
      %1663 = vmatprep.subr.bf16.mxu0 0
      %1664 = vmatpush1.bf16.msra.mxu0 0
      %1665 = vmatprep.subr.bf16.mxu0 0
      %1666 = vmatpush1.bf16.msra.mxu0 0
      %1667 = vmatprep.subr.bf16.mxu0 0
      %1668 = vmatpush1.bf16.msra.mxu0 0
      %1669 = vmatprep.subr.bf16.mxu0 0
      %1670 = vmatpush1.bf16.msra.mxu0 0
      %1671 = vmatprep.subr.bf16.mxu0 0
      %1672 = vmatpush1.bf16.msra.mxu0 0
      %1673 = vmatprep.subr.bf16.mxu0 0
      %1674 = vmatpush1.bf16.msra.mxu0 0
      %1675 = vmatprep.subr.bf16.mxu0 0
      %1676 = vmatpush1.bf16.msra.mxu0 0
      %1677 = vmatprep.mubr.bf16.mxu0 0
      %1678 = vmatmul.mubr.bf16.gmra.mrb[0].mxu0 %v1520
      %v1679 = vpop.f32.mrb[0].mxu0
      %v1680 = vadd.f32 0.0, %v1679
      %v1681 = vpop.f32.mrb[0].mxu0
      %v1682 = vadd.f32 0.0, %v1681
      %v1683 = vpop.f32.mrb[0].mxu0
      %v1684 = vpop.f32.mrb[0].mxu0
      %1685 = vdwg.mxu0
      %v1694 = vcombine.low %v1557, %v1559
      %v1695 = vcombine.low %v1598, %v1600
      %v1697 = vunpack.c.l.s4 1983009808
      %v1698 = vunpack.c.0.s8 %v1697
      %v1699 = vlaneseq
      %v1700 = vshrl.u32 %v1699, 7
      %v1701 = vsub.s32 %v1698, %v1700
      %v1702 = vrot.slane %v1694, %v1701
      %v1704 = vunpack.c.l.s4 1983009808
      %v1705 = vunpack.c.0.s8 %v1704
      %v1706 = vlaneseq
      %v1707 = vshrl.u32 %v1706, 7
      %v1708 = vsub.s32 %v1705, %v1707
      %v1709 = vrot.slane %v1695, %v1708
      %v1710 = vcombine.low %v1702, %v1709
      %v1711 = vcombine.low %v1639, %v1641
      %v1712 = vcombine.low %v1680, %v1682
      %v1714 = vunpack.c.l.s4 1983009808
      %v1715 = vunpack.c.0.s8 %v1714
      %v1716 = vlaneseq
      %v1717 = vshrl.u32 %v1716, 7
      %v1718 = vsub.s32 %v1715, %v1717
      %v1719 = vrot.slane %v1711, %v1718
      %v1721 = vunpack.c.l.s4 1983009808
      %v1722 = vunpack.c.0.s8 %v1721
      %v1723 = vlaneseq
      %v1724 = vshrl.u32 %v1723, 7
      %v1725 = vsub.s32 %v1722, %v1724
      %v1726 = vrot.slane %v1712, %v1725
      %v1727 = vcombine.low %v1719, %v1726
      %1730 = vst [vmem:[%s356] sm:$0xff] %v1710
      %1731 = vst [vmem:[%s356 + $0x8] sm:$0xff] %v1727
      %p1732 = scmp.lt.s32.totalorder %s21, 1
      %s1733 = scalar_select %p1732, %s21, 1
      %s1734 = smul.addr %s1733, 8
      %s1735 = smul.addr %s1734, 2
      %s1736 = scalar_lea.vmem %s8, %s1735
      %p1737 = scmp.lt.s32.totalorder %s21, 1
      %s1738 = scalar_select %p1737, %s21, 1
      %s1739 = smul.addr %s1738, 2
      %s1740 = scalar_lea.vmem %s9, %s1739
      // Predicated region
      $region53: #{core.1} parent=51 // pred_check
        %p1741 = pneg %p217
      $region54: #{core.1} parent=51 // pred_check_branch
        %1743 = sbr.rel (%p1741) target = $region56
      $region55: #{core.1} parent=51 // pred_region
        _
      $region56: #{core.1} parent=51 // pred_fallthru
        _
      // Predicated region
      $region57: #{core.1} parent=51 // pred_check
        %p1744 = pneg %p243
      $region58: #{core.1} parent=51 // pred_check_branch
        %1746 = sbr.rel (%p1744) target = $region60
      $region59: #{core.1} parent=51 // pred_region
        _
      $region60: #{core.1} parent=51 // pred_fallthru
        _
    $region52: #{core.1} parent=5 // pred_fallthru
      _
    %p1747 = scmp.le.s32.totalorder 2, %s16
    // Predicated region
    $region61: #{core.1} parent=5 // pred_check
      %p1748 = pneg %p1747
    $region62: #{core.1} parent=5 // pred_check_branch
      %1750 = sbr.rel (%p1748) target = $region64
    $region63: #{core.1} parent=5 // pred_region
      %s1751 = ssub.s32 %s16, 2
      // Predicated region
      $region65: #{core.1} parent=63 // pred_check
        %p1752 = pneg %p223
      $region66: #{core.1} parent=63 // pred_check_branch
        %1754 = sbr.rel (%p1752) target = $region68
      $region67: #{core.1} parent=63 // pred_region
        %p1755 = scmp.lt.s32.totalorder %s22, 1
        %s1756 = scalar_select %p1755, %s22, 1
        %s1757 = smul.addr %s1756, 8
        %s1758 = smul.addr %s1757, 2
        %s1759 = scalar_lea.vmem %s8, %s1758
      $region68: #{core.1} parent=63 // pred_fallthru
        _
      // Predicated region
      $region69: #{core.1} parent=63 // pred_check
        %p1760 = pneg %p249
      $region70: #{core.1} parent=63 // pred_check_branch
        %1762 = sbr.rel (%p1760) target = $region72
      $region71: #{core.1} parent=63 // pred_region
        %p1763 = scmp.lt.s32.totalorder %s22, 1
        %s1764 = scalar_select %p1763, %s22, 1
        %s1765 = smul.addr %s1764, 2
        %s1766 = scalar_lea.vmem %s9, %s1765
      $region72: #{core.1} parent=63 // pred_fallthru
        _
    $region64: #{core.1} parent=5 // pred_fallthru
      _
  $region6: #{core.1} parent=0 // loop_footer
    %s20 = sadd.s32 1, %s16
  $region7: #{core.1} parent=0 // loop_footer_branch
    %15 = sbr.rel target = $region3
  $region8: #{core.1} parent=0 // loop_exit
    _

</llo_original>
